<compile_context>
chip_gen: v6e
topology: v6e:2x2x1
jax: 0.10.0
libtpu: 0.0.40
codegen_flags: <defaults>
</compile_context>

<pallas_src>
import math

import jax
import jax.numpy as jnp
from jax import lax
from jax.experimental import pallas as pl
from jax.experimental.pallas import tpu as pltpu


def _round_up(x, m):
    return (x + m - 1) // m * m


def _choose_batch_tile(bp, batch_tile):
    """Largest multiple-of-8 divisor of bp that is <= batch_tile, preferring
    >=2 batch shards (v7x megacore) when the batch is big enough."""
    cands = [8 * d for d in range(1, bp // 8 + 1) if (bp // 8) % d == 0]
    pref = [t for t in cands if t <= batch_tile and (bp < 16 or bp // t >= 2)]
    if pref:
        return max(pref)
    ok = [t for t in cands if t <= batch_tile]
    return max(ok) if ok else min(cands)


def _vmem_limit_bytes(tc, tb, hp, gx_itemsize, w_itemsize, out_itemsize):
    gx = 2 * tc * tb * 4 * hp * gx_itemsize        # gx double buffer
    w = hp * 4 * hp * w_itemsize                   # resident weight (Buffered(1))
    outb = 2 * tc * tb * hp * out_itemsize         # seq output double buffer
    hncn = 2 * 2 * tb * hp * out_itemsize          # h_n / c_n double buffers
    h0c0 = 2 * 2 * tb * hp * 4                     # h0 / c0 double buffers (f32)
    scr = 2 * tb * hp * 4                          # h/c f32 scratch
    need = gx + w + outb + hncn + h0c0 + scr + (4 << 20)   # headroom for spills
    try:
        phys = int(pltpu.get_tpu_info().vmem_capacity_bytes)
    except Exception:                               # noqa: BLE001 - best effort
        phys = 64 << 20                             # v7x per-TC size (smallest)
    return int(min(max(need, 32 << 20), max(phys - (2 << 20), 32 << 20)))


def _make_lstm_kernel(seq_len, time_chunk, needs_tail_mask, approx_sigmoid):
    """Builds one (batch-shard, time-chunk) grid-step kernel body."""

    def sigmoid(x):
        if approx_sigmoid:
            # EUP reciprocal frees VALU slots behind the MXU result pops.
            return pl.reciprocal(1.0 + jnp.exp(-x), approx=True)
        return jax.nn.sigmoid(x)

    def kernel(gx_ref, whh_ref, h0_ref, c0_ref, out_ref, hn_ref, cn_ref,
               h_scr, c_scr):
        # gx_ref : (TC, TB, 4*Hp)  precomputed x_t @ W_ih^T + bias (gate-padded)
        # whh_ref: (Hp, 4*Hp)      recurrent weight W_hh^T, resident, Buffered(1)
        # h0/c0  : (1, TB, Hp)     initial state (zero-padded)
        # out_ref: (TC, TB, Hp)    hidden states for this time chunk
        # hn/cn  : (1, TB, Hp)     final states (written only on last chunk)
        # h/c_scr: (TB, Hp)        f32 state carried across time chunks
        t_blk = pl.program_id(1)

        @pl.when(t_blk == 0)
        def _():
            h_scr[...] = h0_ref[0].astype(jnp.float32)
            c_scr[...] = c0_ref[0].astype(jnp.float32)

        whh = whh_ref[...]                      # resident recurrent weight
        hp = h_scr.shape[-1]

        def step(s, carry):
            h, c = carry
            gates = gx_ref[s].astype(jnp.float32) + jnp.dot(
                h.astype(whh.dtype), whh, preferred_element_type=jnp.float32)
            # Lane-aligned gate slabs (each Hp = multiple of 128 lanes wide).
            i = sigmoid(gates[:, 0 * hp:1 * hp])
            f = sigmoid(gates[:, 1 * hp:2 * hp])
            g = jnp.tanh(gates[:, 2 * hp:3 * hp])
            o = sigmoid(gates[:, 3 * hp:4 * hp])
            c_new = f * c + i * g
            h_new = o * jnp.tanh(c_new)
            if needs_tail_mask:
                valid = (t_blk * time_chunk + s) < seq_len
                h_new = jnp.where(valid, h_new, h)
                c_new = jnp.where(valid, c_new, c)
            out_ref[s] = h_new.astype(out_ref.dtype)
            return h_new, c_new

        unroll = time_chunk if time_chunk <= 8 else 8
        h, c = lax.fori_loop(0, time_chunk, step, (h_scr[...], c_scr[...]),
                             unroll=unroll)
        h_scr[...] = h
        c_scr[...] = c

        @pl.when(t_blk == pl.num_programs(1) - 1)
        def _():
            hn_ref[0] = h.astype(hn_ref.dtype)
            cn_ref[0] = c.astype(cn_ref.dtype)

    return kernel


def prepare_lstm_weights(w_ih, w_hh, b_ih, b_hh, *, param_dtype=jnp.bfloat16):
    """One-time weight re-layout: transpose + per-gate 128-lane padding.

    Padded rows / lanes are zero, which keeps the recurrence exact (padded h/c
    lanes never feed real lanes because the corresponding W_hh rows are zero).
    """
    f32 = jnp.float32
    four_h, in_size = w_ih.shape
    h = four_h // 4
    hp = _round_up(h, 128)

    w_ih_t = jnp.asarray(w_ih, f32).T                       # (In, 4H)
    w_hh_t = jnp.asarray(w_hh, f32).T                       # (H, 4H)
    bias = jnp.asarray(b_ih, f32) + jnp.asarray(b_hh, f32)  # (4H,)

    w_ih_t_p = jnp.pad(w_ih_t.reshape(in_size, 4, h),
                       ((0, 0), (0, 0), (0, hp - h))).reshape(in_size, 4 * hp)
    w_hh_t_p = jnp.pad(w_hh_t.reshape(h, 4, h),
                       ((0, hp - h), (0, 0), (0, hp - h))).reshape(hp, 4 * hp)
    bias_p = jnp.pad(bias.reshape(4, h), ((0, 0), (0, hp - h))).reshape(4 * hp)

    return {
        "w_ih_t_p": w_ih_t_p,                       # kept f32 (XLA projection)
        "w_hh_t_p": w_hh_t_p.astype(param_dtype),   # resident in kernel
        "bias_p": bias_p,
        "H": h, "Hp": hp, "In": in_size,
    }


def lstm_forward_pallas(x, prepared, hx=None, *, time_chunk=16, batch_tile=64,
                        approx_sigmoid=True):
    """Single-layer LSTM forward, PyTorch semantics.

    x: (T, B, In) — nn.LSTM default layout (batch_first=False).
    hx: optional (h0, c0), each (1, B, H).  None -> zero initial state.
    Returns (output (T,B,H), (h_n (1,B,H), c_n (1,B,H))).
    """
    f32 = jnp.float32
    T, B, In = x.shape
    H, Hp = prepared["H"], prepared["Hp"]
    assert prepared["In"] == In
    Bp = _round_up(B, 8)

    TB = _choose_batch_tile(Bp, batch_tile)
    TC = max(1, min(time_chunk, T))
    Tp = _round_up(T, TC)
    needs_tail_mask = Tp != T
    nB, nT = Bp // TB, Tp // TC

    param_dtype = prepared["w_hh_t_p"].dtype
    gx_dtype = f32 if param_dtype == jnp.dtype(f32) else jnp.bfloat16
    out_dtype = x.dtype

    # ---- Hoisted, time-parallel input projection (one big MXU-friendly
    #      matmul in plain XLA; bias folded in).  gx stored narrow (bf16 by
    #      default) — it is the dominant HBM stream of the kernel.
    x_p = jnp.pad(jnp.asarray(x, f32), ((0, 0), (0, Bp - B), (0, 0)))
    gx = (jnp.dot(x_p.reshape(T * Bp, In), prepared["w_ih_t_p"],
                  preferred_element_type=f32) + prepared["bias_p"])
    gx = gx.reshape(T, Bp, 4 * Hp).astype(gx_dtype)
    if Tp != T:
        gx = jnp.pad(gx, ((0, Tp - T), (0, 0), (0, 0)))

    # ---- Initial state (zero-padded so the padded-lane invariant holds).
    if hx is None:
        h0_p = jnp.zeros((1, Bp, Hp), f32)
        c0_p = jnp.zeros((1, Bp, Hp), f32)
    else:
        h0, c0 = hx
        h0_p = jnp.pad(jnp.asarray(h0, f32).reshape(1, B, H),
                       ((0, 0), (0, Bp - B), (0, Hp - H)))
        c0_p = jnp.pad(jnp.asarray(c0, f32).reshape(1, B, H),
                       ((0, 0), (0, Bp - B), (0, Hp - H)))

    vmem_limit = _vmem_limit_bytes(
        TC, TB, Hp,
        jnp.dtype(gx_dtype).itemsize,
        jnp.dtype(param_dtype).itemsize,
        jnp.dtype(out_dtype).itemsize)

    kernel = _make_lstm_kernel(T, TC, needs_tail_mask, approx_sigmoid)

    out_p, hn_p, cn_p = pl.pallas_call(
        kernel,
        out_shape=(
            jax.ShapeDtypeStruct((Tp, Bp, Hp), out_dtype),
            jax.ShapeDtypeStruct((1, Bp, Hp), out_dtype),
            jax.ShapeDtypeStruct((1, Bp, Hp), out_dtype),
        ),
        grid_spec=pltpu.PrefetchScalarGridSpec(
            num_scalar_prefetch=0,
            grid=(nB, nT),
            in_specs=[
                # precomputed gate inputs, one time chunk per step
                pl.BlockSpec((TC, TB, 4 * Hp), lambda b, t: (t, b, 0)),
                # recurrent weight, resident; constant index_map -> 1 buffer
                pl.BlockSpec((Hp, 4 * Hp), lambda b, t: (0, 0),
                             pipeline_mode=pl.Buffered(1)),
                # initial hidden / cell state for this batch shard
                pl.BlockSpec((1, TB, Hp), lambda b, t: (0, b, 0)),
                pl.BlockSpec((1, TB, Hp), lambda b, t: (0, b, 0)),
            ],
            out_specs=[
                pl.BlockSpec((TC, TB, Hp), lambda b, t: (t, b, 0)),  # seq out
                pl.BlockSpec((1, TB, Hp), lambda b, t: (0, b, 0)),   # h_n
                pl.BlockSpec((1, TB, Hp), lambda b, t: (0, b, 0)),   # c_n
            ],
            scratch_shapes=[
                pltpu.VMEM((TB, Hp), jnp.float32),   # h state
                pltpu.VMEM((TB, Hp), jnp.float32),   # c state
            ],
        ),
        compiler_params=pltpu.CompilerParams(
            # batch shards are independent (v7x: both TCs); time is sequential
            dimension_semantics=("parallel", "arbitrary"),
            vmem_limit_bytes=vmem_limit),
    )(gx, prepared["w_hh_t_p"], h0_p, c0_p)

    out = out_p[:T, :B, :H]
    h_n = hn_p[:, :B, :H]
    c_n = cn_p[:, :B, :H]
    return out, (h_n, c_n)


def lstm_forward_ref(x, w_ih, w_hh, b_ih, b_hh, hx=None):
    """Pure-JAX reference (matches torch.nn.LSTM, num_layers=1)."""
    T, B, In = x.shape
    H = w_ih.shape[0] // 4

    def step(carry, x_t):
        h, c = carry
        gates = x_t @ w_ih.T + b_ih + h @ w_hh.T + b_hh
        i = jax.nn.sigmoid(gates[:, 0 * H:1 * H])
        f = jax.nn.sigmoid(gates[:, 1 * H:2 * H])
        g = jnp.tanh(gates[:, 2 * H:3 * H])
        o = jax.nn.sigmoid(gates[:, 3 * H:4 * H])
        c = f * c + i * g
        h = o * jnp.tanh(c)
        return (h, c), h

    if hx is None:
        h0 = jnp.zeros((B, H), x.dtype)
        c0 = jnp.zeros((B, H), x.dtype)
    else:
        h0, c0 = hx
        h0 = jnp.asarray(h0, x.dtype).reshape(B, H)
        c0 = jnp.asarray(c0, x.dtype).reshape(B, H)
    (hT, cT), ys = lax.scan(step, (h0, c0), x)
    return ys, (hT[None], cT[None])


class HyperLSTMParams:
    """Deterministic parameter construction mirroring HyperLSTM.__init__."""

    def __init__(self, key, input_size, hidden_size, context_size,
                 block_in, block_out, num_layers=1):
        assert num_layers == 1
        self.input_size = input_size
        self.hidden_size = hidden_size
        H = hidden_size
        k = 1.0 / math.sqrt(H)
        keys = jax.random.split(key, 4)
        # torch.nn.LSTM init: U(-1/sqrt(H), 1/sqrt(H)) for all params
        self.w_ih = jax.random.uniform(keys[0], (4 * H, input_size),
                                       jnp.float32, -k, k)
        self.w_hh = jax.random.uniform(keys[1], (4 * H, H),
                                       jnp.float32, -k, k)
        self.b_ih = jax.random.uniform(keys[2], (4 * H,), jnp.float32, -k, k)
        self.b_hh = jax.random.uniform(keys[3], (4 * H,), jnp.float32, -k, k)

        # Projector bookkeeping + context parameter (unused in forward()).
        self.projectors_per_param = {}
        self.num_projectors = 0
        for name, (out_size, in_size) in (("weight_ih_l0", self.w_ih.shape),
                                          ("weight_hh_l0", self.w_hh.shape)):
            assert in_size % block_in == 0 and out_size % block_out == 0
            n = (out_size // block_out) * (in_size // block_in)
            self.projectors_per_param[name] = n
            self.num_projectors += n
        self.context = jnp.full((self.num_projectors, int(context_size), 1),
                                1.0 / math.sqrt(hidden_size), jnp.float32)

        # Padded / transposed weights prepared once per param_dtype (not on
        # every forward call).
        self._prepared = {}

    def _get_prepared(self, param_dtype):
        key = jnp.dtype(param_dtype).name
        if key not in self._prepared:
            self._prepared[key] = prepare_lstm_weights(
                self.w_ih, self.w_hh, self.b_ih, self.b_hh,
                param_dtype=param_dtype)
        return self._prepared[key]

    def forward(self, x, hx=None, *, param_dtype=jnp.bfloat16,
                approx_sigmoid=True, time_chunk=16, batch_tile=64):
        # Default path: bf16 resident W_hh + bf16 gx + EUP-approx sigmoid
        # (gate math / state stay f32).  Pass param_dtype=jnp.float32 and
        # approx_sigmoid=False for a numerically tight path.
        return lstm_forward_pallas(
            x, self._get_prepared(param_dtype), hx,
            time_chunk=time_chunk, batch_tile=batch_tile,
            approx_sigmoid=approx_sigmoid)


if __name__ == "__main__":
    # Small shapes consistent with the module.
    seq_len, batch = 8, 2
    input_size, hidden_size = 32, 32
    context_size, block_in, block_out = 16, 8, 8

    key = jax.random.PRNGKey(0)
    pkey, xkey, hkey, ckey = jax.random.split(key, 4)
    model = HyperLSTMParams(pkey, input_size, hidden_size, context_size,
                            block_in, block_out)

    x = jax.random.normal(xkey, (seq_len, batch, input_size), jnp.float32)

    # ---- Tight-precision path (f32 weights/gx, exact sigmoid) vs reference.
    out, (h_n, c_n) = model.forward(x, param_dtype=jnp.float32,
                                    approx_sigmoid=False)
    out = jax.block_until_ready(out)
    out_r, (h_r, c_r) = lstm_forward_ref(x, model.w_ih, model.w_hh,
                                         model.b_ih, model.b_hh)
    assert out.shape == (seq_len, batch, hidden_size)
    assert h_n.shape == (1, batch, hidden_size)
    assert c_n.shape == (1, batch, hidden_size)
    assert jnp.allclose(out, out_r, atol=1e-5, rtol=1e-5)
    assert jnp.allclose(h_n, h_r, atol=1e-5, rtol=1e-5)
    assert jnp.allclose(c_n, c_r, atol=1e-5, rtol=1e-5)

    # ---- Non-None hx path (now supported).
    h0 = 0.1 * jax.random.normal(hkey, (1, batch, hidden_size), jnp.float32)
    c0 = 0.1 * jax.random.normal(ckey, (1, batch, hidden_size), jnp.float32)
    out_h, (hn_h, cn_h) = model.forward(x, (h0, c0), param_dtype=jnp.float32,
                                        approx_sigmoid=False)
    out_h = jax.block_until_ready(out_h)
    out_hr, (hn_hr, cn_hr) = lstm_forward_ref(x, model.w_ih, model.w_hh,
                                              model.b_ih, model.b_hh, (h0, c0))
    assert jnp.allclose(out_h, out_hr, atol=1e-5, rtol=1e-5)
    assert jnp.allclose(hn_h, hn_hr, atol=1e-5, rtol=1e-5)
    assert jnp.allclose(cn_h, cn_hr, atol=1e-5, rtol=1e-5)

    # ---- T not divisible by the time chunk (tail-mask path).
    T2 = 11
    x2 = jax.random.normal(jax.random.PRNGKey(3),
                           (T2, batch, input_size), jnp.float32)
    out2, (hn2, cn2) = model.forward(x2, param_dtype=jnp.float32,
                                     approx_sigmoid=False, time_chunk=4)
    out2 = jax.block_until_ready(out2)
    out2_r, (hn2_r, cn2_r) = lstm_forward_ref(x2, model.w_ih, model.w_hh,
                                              model.b_ih, model.b_hh)
    assert out2.shape == (T2, batch, hidden_size)
    assert jnp.allclose(out2, out2_r, atol=1e-5, rtol=1e-5)
    assert jnp.allclose(hn2, hn2_r, atol=1e-5, rtol=1e-5)
    assert jnp.allclose(cn2, cn2_r, atol=1e-5, rtol=1e-5)

    # ---- Default fast path (bf16 W_hh + bf16 gx + approx sigmoid): looser
    #      tolerance (documented: this is the performance default).
    out_bf, (h_bf, c_bf) = model.forward(x)
    out_bf = jax.block_until_ready(out_bf)
    assert jnp.allclose(out_bf, out_r, atol=1e-1, rtol=1e-1)
    assert jnp.allclose(h_bf, h_r, atol=1e-1, rtol=1e-1)
    assert jnp.allclose(c_bf, c_r, atol=1e-1, rtol=1e-1)

    print("KERNEL_OK")
</pallas_src>

<mosaic_0001>
module attributes {stable_mosaic.version = 11 : i64} {
  func.func @kernel(%arg0: i32, %arg1: i32, %arg2: memref<8x8x512xf32, #tpu.memory_space<vmem>>, %arg3: memref<128x512xf32, #tpu.memory_space<vmem>>, %arg4: memref<1x8x128xf32, #tpu.memory_space<vmem>>, %arg5: memref<1x8x128xf32, #tpu.memory_space<vmem>>, %arg6: memref<8x8x128xf32, #tpu.memory_space<vmem>>, %arg7: memref<1x8x128xf32, #tpu.memory_space<vmem>>, %arg8: memref<1x8x128xf32, #tpu.memory_space<vmem>>, %arg9: memref<8x128xf32, #tpu.memory_space<vmem>>, %arg10: memref<8x128xf32, #tpu.memory_space<vmem>>) attributes {dimension_semantics = [#tpu.dimension_semantics<parallel>, #tpu.dimension_semantics<arbitrary>], iteration_bounds = array<i64: 1, 1>, scalar_prefetch = 0 : i64, scratch_operands = 2 : i64, tpu.core_type = #tpu.core_type<tc>, window_params = [{transform_indices = @transform_0, window_bounds = array<i64: 8, 8, 512>}, {pipeline_mode = #tpu.pipeline_mode<synchronous>, transform_indices = @transform_1, window_bounds = array<i64: 128, 512>}, {transform_indices = @transform_2, window_bounds = array<i64: 1, 8, 128>}, {transform_indices = @transform_3, window_bounds = array<i64: 1, 8, 128>}, {transform_indices = @transform_4, window_bounds = array<i64: 8, 8, 128>}, {transform_indices = @transform_5, window_bounds = array<i64: 1, 8, 128>}, {transform_indices = @transform_6, window_bounds = array<i64: 1, 8, 128>}]} {
    %c0_i32 = arith.constant 0 : i32
    %0 = arith.cmpi eq, %arg1, %c0_i32 : i32
    %1 = arith.extui %0 : i1 to i32
    %c0_i32_0 = arith.constant 0 : i32
    %2 = arith.cmpi ne, %1, %c0_i32_0 : i32
    scf.if %2 {
      %c0_76 = arith.constant 0 : index
      %c0_77 = arith.constant 0 : index
      %c0_78 = arith.constant 0 : index
      %283 = vector.load %arg4[%c0_76, %c0_77, %c0_78] : memref<1x8x128xf32, #tpu.memory_space<vmem>>, vector<1x8x128xf32>
      %284 = vector.shape_cast %283 : vector<1x8x128xf32> to vector<8x128xf32>
      %c0_79 = arith.constant 0 : index
      %c0_80 = arith.constant 0 : index
      %285 = vector.load %arg9[%c0_79, %c0_80] : memref<8x128xf32, #tpu.memory_space<vmem>>, vector<8x128xf32>
      tpu.vector_store %arg9[%c0_79, %c0_80], %284 {strides = array<i32>} : memref<8x128xf32, #tpu.memory_space<vmem>>, vector<8x128xf32>,
      %c0_81 = arith.constant 0 : index
      %c0_82 = arith.constant 0 : index
      %c0_83 = arith.constant 0 : index
      %286 = vector.load %arg5[%c0_81, %c0_82, %c0_83] : memref<1x8x128xf32, #tpu.memory_space<vmem>>, vector<1x8x128xf32>
      %287 = vector.shape_cast %286 : vector<1x8x128xf32> to vector<8x128xf32>
      %c0_84 = arith.constant 0 : index
      %c0_85 = arith.constant 0 : index
      %288 = vector.load %arg10[%c0_84, %c0_85] : memref<8x128xf32, #tpu.memory_space<vmem>>, vector<8x128xf32>
      tpu.vector_store %arg10[%c0_84, %c0_85], %287 {strides = array<i32>} : memref<8x128xf32, #tpu.memory_space<vmem>>, vector<8x128xf32>,
    } else {
    }
    %c0 = arith.constant 0 : index
    %c0_1 = arith.constant 0 : index
    %3 = vector.load %arg3[%c0, %c0_1] : memref<128x512xf32, #tpu.memory_space<vmem>>, vector<128x512xf32>
    %c0_2 = arith.constant 0 : index
    %c0_3 = arith.constant 0 : index
    %4 = vector.load %arg9[%c0_2, %c0_3] : memref<8x128xf32, #tpu.memory_space<vmem>>, vector<8x128xf32>
    %c0_4 = arith.constant 0 : index
    %c0_5 = arith.constant 0 : index
    %5 = vector.load %arg10[%c0_4, %c0_5] : memref<8x128xf32, #tpu.memory_space<vmem>>, vector<8x128xf32>
    %c0_i32_6 = arith.constant 0 : i32
    %6 = arith.index_cast %c0_i32_6 : i32 to index
    %c0_7 = arith.constant 0 : index
    %c0_8 = arith.constant 0 : index
    %7 = vector.load %arg2[%6, %c0_7, %c0_8] : memref<8x8x512xf32, #tpu.memory_space<vmem>>, vector<1x8x512xf32>
    %8 = vector.shape_cast %7 : vector<1x8x512xf32> to vector<8x512xf32>
    %cst = arith.constant dense<0.000000e+00> : vector<8x512xf32>
    %9 = tpu.matmul %4, %3, %cst {dimension_numbers = #tpu.dot_dimension_numbers<[1], [0], [0], [1], [0, 0, 1, 1], [], []>} : vector<8x128xf32>, vector<128x512xf32>, vector<8x512xf32> -> vector<8x512xf32>
    %10 = arith.addf %8, %9 : vector<8x512xf32>
    %11 = vector.extract_strided_slice %10 {offsets = [0, 0], sizes = [8, 128], strides = [1, 1]} : vector<8x512xf32> to vector<8x128xf32>
    %12 = arith.negf %11 : vector<8x128xf32>
    %13 = math.exp %12 : vector<8x128xf32>
    %cst_9 = arith.constant 1.000000e+00 : f32
    %14 = vector.broadcast %cst_9 : f32 to vector<8x128xf32>
    %15 = arith.addf %14, %13 : vector<8x128xf32>
    %16 = arith.divf %14, %15 : vector<8x128xf32>
    %17 = vector.extract_strided_slice %10 {offsets = [0, 128], sizes = [8, 128], strides = [1, 1]} : vector<8x512xf32> to vector<8x128xf32>
    %18 = arith.negf %17 : vector<8x128xf32>
    %19 = math.exp %18 : vector<8x128xf32>
    %cst_10 = arith.constant 1.000000e+00 : f32
    %20 = vector.broadcast %cst_10 : f32 to vector<8x128xf32>
    %21 = arith.addf %20, %19 : vector<8x128xf32>
    %22 = arith.divf %20, %21 : vector<8x128xf32>
    %23 = vector.extract_strided_slice %10 {offsets = [0, 256], sizes = [8, 128], strides = [1, 1]} : vector<8x512xf32> to vector<8x128xf32>
    %24 = math.tanh %23 : vector<8x128xf32>
    %25 = vector.extract_strided_slice %10 {offsets = [0, 384], sizes = [8, 128], strides = [1, 1]} : vector<8x512xf32> to vector<8x128xf32>
    %26 = arith.negf %25 : vector<8x128xf32>
    %27 = math.exp %26 : vector<8x128xf32>
    %cst_11 = arith.constant 1.000000e+00 : f32
    %28 = vector.broadcast %cst_11 : f32 to vector<8x128xf32>
    %29 = arith.addf %28, %27 : vector<8x128xf32>
    %30 = arith.divf %28, %29 : vector<8x128xf32>
    %31 = arith.mulf %22, %5 : vector<8x128xf32>
    %32 = arith.mulf %16, %24 : vector<8x128xf32>
    %33 = arith.addf %31, %32 : vector<8x128xf32>
    %34 = math.tanh %33 : vector<8x128xf32>
    %35 = arith.mulf %30, %34 : vector<8x128xf32>
    %36 = arith.index_cast %c0_i32_6 : i32 to index
    %c0_12 = arith.constant 0 : index
    %c0_13 = arith.constant 0 : index
    %37 = vector.load %arg6[%36, %c0_12, %c0_13] : memref<8x8x128xf32, #tpu.memory_space<vmem>>, vector<1x8x128xf32>
    %38 = vector.shape_cast %37 : vector<1x8x128xf32> to vector<8x128xf32>
    %39 = vector.shape_cast %35 : vector<8x128xf32> to vector<1x8x128xf32>
    tpu.vector_store %arg6[%36, %c0_12, %c0_13], %39 {strides = array<i32>} : memref<8x8x128xf32, #tpu.memory_space<vmem>>, vector<1x8x128xf32>,
    %c1_i32 = arith.constant 1 : i32
    %40 = arith.index_cast %c1_i32 : i32 to index
    %c0_14 = arith.constant 0 : index
    %c0_15 = arith.constant 0 : index
    %41 = vector.load %arg2[%40, %c0_14, %c0_15] : memref<8x8x512xf32, #tpu.memory_space<vmem>>, vector<1x8x512xf32>
    %42 = vector.shape_cast %41 : vector<1x8x512xf32> to vector<8x512xf32>
    %cst_16 = arith.constant dense<0.000000e+00> : vector<8x512xf32>
    %43 = tpu.matmul %35, %3, %cst_16 {dimension_numbers = #tpu.dot_dimension_numbers<[1], [0], [0], [1], [0, 0, 1, 1], [], []>} : vector<8x128xf32>, vector<128x512xf32>, vector<8x512xf32> -> vector<8x512xf32>
    %44 = arith.addf %42, %43 : vector<8x512xf32>
    %45 = vector.extract_strided_slice %44 {offsets = [0, 0], sizes = [8, 128], strides = [1, 1]} : vector<8x512xf32> to vector<8x128xf32>
    %46 = arith.negf %45 : vector<8x128xf32>
    %47 = math.exp %46 : vector<8x128xf32>
    %cst_17 = arith.constant 1.000000e+00 : f32
    %48 = vector.broadcast %cst_17 : f32 to vector<8x128xf32>
    %49 = arith.addf %48, %47 : vector<8x128xf32>
    %50 = arith.divf %48, %49 : vector<8x128xf32>
    %51 = vector.extract_strided_slice %44 {offsets = [0, 128], sizes = [8, 128], strides = [1, 1]} : vector<8x512xf32> to vector<8x128xf32>
    %52 = arith.negf %51 : vector<8x128xf32>
    %53 = math.exp %52 : vector<8x128xf32>
    %cst_18 = arith.constant 1.000000e+00 : f32
    %54 = vector.broadcast %cst_18 : f32 to vector<8x128xf32>
    %55 = arith.addf %54, %53 : vector<8x128xf32>
    %56 = arith.divf %54, %55 : vector<8x128xf32>
    %57 = vector.extract_strided_slice %44 {offsets = [0, 256], sizes = [8, 128], strides = [1, 1]} : vector<8x512xf32> to vector<8x128xf32>
    %58 = math.tanh %57 : vector<8x128xf32>
    %59 = vector.extract_strided_slice %44 {offsets = [0, 384], sizes = [8, 128], strides = [1, 1]} : vector<8x512xf32> to vector<8x128xf32>
    %60 = arith.negf %59 : vector<8x128xf32>
    %61 = math.exp %60 : vector<8x128xf32>
    %cst_19 = arith.constant 1.000000e+00 : f32
    %62 = vector.broadcast %cst_19 : f32 to vector<8x128xf32>
    %63 = arith.addf %62, %61 : vector<8x128xf32>
    %64 = arith.divf %62, %63 : vector<8x128xf32>
    %65 = arith.mulf %56, %33 : vector<8x128xf32>
    %66 = arith.mulf %50, %58 : vector<8x128xf32>
    %67 = arith.addf %65, %66 : vector<8x128xf32>
    %68 = math.tanh %67 : vector<8x128xf32>
    %69 = arith.mulf %64, %68 : vector<8x128xf32>
    %70 = arith.index_cast %c1_i32 : i32 to index
    %c0_20 = arith.constant 0 : index
    %c0_21 = arith.constant 0 : index
    %71 = vector.load %arg6[%70, %c0_20, %c0_21] : memref<8x8x128xf32, #tpu.memory_space<vmem>>, vector<1x8x128xf32>
    %72 = vector.shape_cast %71 : vector<1x8x128xf32> to vector<8x128xf32>
    %73 = vector.shape_cast %69 : vector<8x128xf32> to vector<1x8x128xf32>
    tpu.vector_store %arg6[%70, %c0_20, %c0_21], %73 {strides = array<i32>} : memref<8x8x128xf32, #tpu.memory_space<vmem>>, vector<1x8x128xf32>,
    %c2_i32 = arith.constant 2 : i32
    %74 = arith.index_cast %c2_i32 : i32 to index
    %c0_22 = arith.constant 0 : index
    %c0_23 = arith.constant 0 : index
    %75 = vector.load %arg2[%74, %c0_22, %c0_23] : memref<8x8x512xf32, #tpu.memory_space<vmem>>, vector<1x8x512xf32>
    %76 = vector.shape_cast %75 : vector<1x8x512xf32> to vector<8x512xf32>
    %cst_24 = arith.constant dense<0.000000e+00> : vector<8x512xf32>
    %77 = tpu.matmul %69, %3, %cst_24 {dimension_numbers = #tpu.dot_dimension_numbers<[1], [0], [0], [1], [0, 0, 1, 1], [], []>} : vector<8x128xf32>, vector<128x512xf32>, vector<8x512xf32> -> vector<8x512xf32>
    %78 = arith.addf %76, %77 : vector<8x512xf32>
    %79 = vector.extract_strided_slice %78 {offsets = [0, 0], sizes = [8, 128], strides = [1, 1]} : vector<8x512xf32> to vector<8x128xf32>
    %80 = arith.negf %79 : vector<8x128xf32>
    %81 = math.exp %80 : vector<8x128xf32>
    %cst_25 = arith.constant 1.000000e+00 : f32
    %82 = vector.broadcast %cst_25 : f32 to vector<8x128xf32>
    %83 = arith.addf %82, %81 : vector<8x128xf32>
    %84 = arith.divf %82, %83 : vector<8x128xf32>
    %85 = vector.extract_strided_slice %78 {offsets = [0, 128], sizes = [8, 128], strides = [1, 1]} : vector<8x512xf32> to vector<8x128xf32>
    %86 = arith.negf %85 : vector<8x128xf32>
    %87 = math.exp %86 : vector<8x128xf32>
    %cst_26 = arith.constant 1.000000e+00 : f32
    %88 = vector.broadcast %cst_26 : f32 to vector<8x128xf32>
    %89 = arith.addf %88, %87 : vector<8x128xf32>
    %90 = arith.divf %88, %89 : vector<8x128xf32>
    %91 = vector.extract_strided_slice %78 {offsets = [0, 256], sizes = [8, 128], strides = [1, 1]} : vector<8x512xf32> to vector<8x128xf32>
    %92 = math.tanh %91 : vector<8x128xf32>
    %93 = vector.extract_strided_slice %78 {offsets = [0, 384], sizes = [8, 128], strides = [1, 1]} : vector<8x512xf32> to vector<8x128xf32>
    %94 = arith.negf %93 : vector<8x128xf32>
    %95 = math.exp %94 : vector<8x128xf32>
    %cst_27 = arith.constant 1.000000e+00 : f32
    %96 = vector.broadcast %cst_27 : f32 to vector<8x128xf32>
    %97 = arith.addf %96, %95 : vector<8x128xf32>
    %98 = arith.divf %96, %97 : vector<8x128xf32>
    %99 = arith.mulf %90, %67 : vector<8x128xf32>
    %100 = arith.mulf %84, %92 : vector<8x128xf32>
    %101 = arith.addf %99, %100 : vector<8x128xf32>
    %102 = math.tanh %101 : vector<8x128xf32>
    %103 = arith.mulf %98, %102 : vector<8x128xf32>
    %104 = arith.index_cast %c2_i32 : i32 to index
    %c0_28 = arith.constant 0 : index
    %c0_29 = arith.constant 0 : index
    %105 = vector.load %arg6[%104, %c0_28, %c0_29] : memref<8x8x128xf32, #tpu.memory_space<vmem>>, vector<1x8x128xf32>
    %106 = vector.shape_cast %105 : vector<1x8x128xf32> to vector<8x128xf32>
    %107 = vector.shape_cast %103 : vector<8x128xf32> to vector<1x8x128xf32>
    tpu.vector_store %arg6[%104, %c0_28, %c0_29], %107 {strides = array<i32>} : memref<8x8x128xf32, #tpu.memory_space<vmem>>, vector<1x8x128xf32>,
    %c3_i32 = arith.constant 3 : i32
    %108 = arith.index_cast %c3_i32 : i32 to index
    %c0_30 = arith.constant 0 : index
    %c0_31 = arith.constant 0 : index
    %109 = vector.load %arg2[%108, %c0_30, %c0_31] : memref<8x8x512xf32, #tpu.memory_space<vmem>>, vector<1x8x512xf32>
    %110 = vector.shape_cast %109 : vector<1x8x512xf32> to vector<8x512xf32>
    %cst_32 = arith.constant dense<0.000000e+00> : vector<8x512xf32>
    %111 = tpu.matmul %103, %3, %cst_32 {dimension_numbers = #tpu.dot_dimension_numbers<[1], [0], [0], [1], [0, 0, 1, 1], [], []>} : vector<8x128xf32>, vector<128x512xf32>, vector<8x512xf32> -> vector<8x512xf32>
    %112 = arith.addf %110, %111 : vector<8x512xf32>
    %113 = vector.extract_strided_slice %112 {offsets = [0, 0], sizes = [8, 128], strides = [1, 1]} : vector<8x512xf32> to vector<8x128xf32>
    %114 = arith.negf %113 : vector<8x128xf32>
    %115 = math.exp %114 : vector<8x128xf32>
    %cst_33 = arith.constant 1.000000e+00 : f32
    %116 = vector.broadcast %cst_33 : f32 to vector<8x128xf32>
    %117 = arith.addf %116, %115 : vector<8x128xf32>
    %118 = arith.divf %116, %117 : vector<8x128xf32>
    %119 = vector.extract_strided_slice %112 {offsets = [0, 128], sizes = [8, 128], strides = [1, 1]} : vector<8x512xf32> to vector<8x128xf32>
    %120 = arith.negf %119 : vector<8x128xf32>
    %121 = math.exp %120 : vector<8x128xf32>
    %cst_34 = arith.constant 1.000000e+00 : f32
    %122 = vector.broadcast %cst_34 : f32 to vector<8x128xf32>
    %123 = arith.addf %122, %121 : vector<8x128xf32>
    %124 = arith.divf %122, %123 : vector<8x128xf32>
    %125 = vector.extract_strided_slice %112 {offsets = [0, 256], sizes = [8, 128], strides = [1, 1]} : vector<8x512xf32> to vector<8x128xf32>
    %126 = math.tanh %125 : vector<8x128xf32>
    %127 = vector.extract_strided_slice %112 {offsets = [0, 384], sizes = [8, 128], strides = [1, 1]} : vector<8x512xf32> to vector<8x128xf32>
    %128 = arith.negf %127 : vector<8x128xf32>
    %129 = math.exp %128 : vector<8x128xf32>
    %cst_35 = arith.constant 1.000000e+00 : f32
    %130 = vector.broadcast %cst_35 : f32 to vector<8x128xf32>
    %131 = arith.addf %130, %129 : vector<8x128xf32>
    %132 = arith.divf %130, %131 : vector<8x128xf32>
    %133 = arith.mulf %124, %101 : vector<8x128xf32>
    %134 = arith.mulf %118, %126 : vector<8x128xf32>
    %135 = arith.addf %133, %134 : vector<8x128xf32>
    %136 = math.tanh %135 : vector<8x128xf32>
    %137 = arith.mulf %132, %136 : vector<8x128xf32>
    %138 = arith.index_cast %c3_i32 : i32 to index
    %c0_36 = arith.constant 0 : index
    %c0_37 = arith.constant 0 : index
    %139 = vector.load %arg6[%138, %c0_36, %c0_37] : memref<8x8x128xf32, #tpu.memory_space<vmem>>, vector<1x8x128xf32>
    %140 = vector.shape_cast %139 : vector<1x8x128xf32> to vector<8x128xf32>
    %141 = vector.shape_cast %137 : vector<8x128xf32> to vector<1x8x128xf32>
    tpu.vector_store %arg6[%138, %c0_36, %c0_37], %141 {strides = array<i32>} : memref<8x8x128xf32, #tpu.memory_space<vmem>>, vector<1x8x128xf32>,
    %c4_i32 = arith.constant 4 : i32
    %142 = arith.index_cast %c4_i32 : i32 to index
    %c0_38 = arith.constant 0 : index
    %c0_39 = arith.constant 0 : index
    %143 = vector.load %arg2[%142, %c0_38, %c0_39] : memref<8x8x512xf32, #tpu.memory_space<vmem>>, vector<1x8x512xf32>
    %144 = vector.shape_cast %143 : vector<1x8x512xf32> to vector<8x512xf32>
    %cst_40 = arith.constant dense<0.000000e+00> : vector<8x512xf32>
    %145 = tpu.matmul %137, %3, %cst_40 {dimension_numbers = #tpu.dot_dimension_numbers<[1], [0], [0], [1], [0, 0, 1, 1], [], []>} : vector<8x128xf32>, vector<128x512xf32>, vector<8x512xf32> -> vector<8x512xf32>
    %146 = arith.addf %144, %145 : vector<8x512xf32>
    %147 = vector.extract_strided_slice %146 {offsets = [0, 0], sizes = [8, 128], strides = [1, 1]} : vector<8x512xf32> to vector<8x128xf32>
    %148 = arith.negf %147 : vector<8x128xf32>
    %149 = math.exp %148 : vector<8x128xf32>
    %cst_41 = arith.constant 1.000000e+00 : f32
    %150 = vector.broadcast %cst_41 : f32 to vector<8x128xf32>
    %151 = arith.addf %150, %149 : vector<8x128xf32>
    %152 = arith.divf %150, %151 : vector<8x128xf32>
    %153 = vector.extract_strided_slice %146 {offsets = [0, 128], sizes = [8, 128], strides = [1, 1]} : vector<8x512xf32> to vector<8x128xf32>
    %154 = arith.negf %153 : vector<8x128xf32>
    %155 = math.exp %154 : vector<8x128xf32>
    %cst_42 = arith.constant 1.000000e+00 : f32
    %156 = vector.broadcast %cst_42 : f32 to vector<8x128xf32>
    %157 = arith.addf %156, %155 : vector<8x128xf32>
    %158 = arith.divf %156, %157 : vector<8x128xf32>
    %159 = vector.extract_strided_slice %146 {offsets = [0, 256], sizes = [8, 128], strides = [1, 1]} : vector<8x512xf32> to vector<8x128xf32>
    %160 = math.tanh %159 : vector<8x128xf32>
    %161 = vector.extract_strided_slice %146 {offsets = [0, 384], sizes = [8, 128], strides = [1, 1]} : vector<8x512xf32> to vector<8x128xf32>
    %162 = arith.negf %161 : vector<8x128xf32>
    %163 = math.exp %162 : vector<8x128xf32>
    %cst_43 = arith.constant 1.000000e+00 : f32
    %164 = vector.broadcast %cst_43 : f32 to vector<8x128xf32>
    %165 = arith.addf %164, %163 : vector<8x128xf32>
    %166 = arith.divf %164, %165 : vector<8x128xf32>
    %167 = arith.mulf %158, %135 : vector<8x128xf32>
    %168 = arith.mulf %152, %160 : vector<8x128xf32>
    %169 = arith.addf %167, %168 : vector<8x128xf32>
    %170 = math.tanh %169 : vector<8x128xf32>
    %171 = arith.mulf %166, %170 : vector<8x128xf32>
    %172 = arith.index_cast %c4_i32 : i32 to index
    %c0_44 = arith.constant 0 : index
    %c0_45 = arith.constant 0 : index
    %173 = vector.load %arg6[%172, %c0_44, %c0_45] : memref<8x8x128xf32, #tpu.memory_space<vmem>>, vector<1x8x128xf32>
    %174 = vector.shape_cast %173 : vector<1x8x128xf32> to vector<8x128xf32>
    %175 = vector.shape_cast %171 : vector<8x128xf32> to vector<1x8x128xf32>
    tpu.vector_store %arg6[%172, %c0_44, %c0_45], %175 {strides = array<i32>} : memref<8x8x128xf32, #tpu.memory_space<vmem>>, vector<1x8x128xf32>,
    %c5_i32 = arith.constant 5 : i32
    %176 = arith.index_cast %c5_i32 : i32 to index
    %c0_46 = arith.constant 0 : index
    %c0_47 = arith.constant 0 : index
    %177 = vector.load %arg2[%176, %c0_46, %c0_47] : memref<8x8x512xf32, #tpu.memory_space<vmem>>, vector<1x8x512xf32>
    %178 = vector.shape_cast %177 : vector<1x8x512xf32> to vector<8x512xf32>
    %cst_48 = arith.constant dense<0.000000e+00> : vector<8x512xf32>
    %179 = tpu.matmul %171, %3, %cst_48 {dimension_numbers = #tpu.dot_dimension_numbers<[1], [0], [0], [1], [0, 0, 1, 1], [], []>} : vector<8x128xf32>, vector<128x512xf32>, vector<8x512xf32> -> vector<8x512xf32>
    %180 = arith.addf %178, %179 : vector<8x512xf32>
    %181 = vector.extract_strided_slice %180 {offsets = [0, 0], sizes = [8, 128], strides = [1, 1]} : vector<8x512xf32> to vector<8x128xf32>
    %182 = arith.negf %181 : vector<8x128xf32>
    %183 = math.exp %182 : vector<8x128xf32>
    %cst_49 = arith.constant 1.000000e+00 : f32
    %184 = vector.broadcast %cst_49 : f32 to vector<8x128xf32>
    %185 = arith.addf %184, %183 : vector<8x128xf32>
    %186 = arith.divf %184, %185 : vector<8x128xf32>
    %187 = vector.extract_strided_slice %180 {offsets = [0, 128], sizes = [8, 128], strides = [1, 1]} : vector<8x512xf32> to vector<8x128xf32>
    %188 = arith.negf %187 : vector<8x128xf32>
    %189 = math.exp %188 : vector<8x128xf32>
    %cst_50 = arith.constant 1.000000e+00 : f32
    %190 = vector.broadcast %cst_50 : f32 to vector<8x128xf32>
    %191 = arith.addf %190, %189 : vector<8x128xf32>
    %192 = arith.divf %190, %191 : vector<8x128xf32>
    %193 = vector.extract_strided_slice %180 {offsets = [0, 256], sizes = [8, 128], strides = [1, 1]} : vector<8x512xf32> to vector<8x128xf32>
    %194 = math.tanh %193 : vector<8x128xf32>
    %195 = vector.extract_strided_slice %180 {offsets = [0, 384], sizes = [8, 128], strides = [1, 1]} : vector<8x512xf32> to vector<8x128xf32>
    %196 = arith.negf %195 : vector<8x128xf32>
    %197 = math.exp %196 : vector<8x128xf32>
    %cst_51 = arith.constant 1.000000e+00 : f32
    %198 = vector.broadcast %cst_51 : f32 to vector<8x128xf32>
    %199 = arith.addf %198, %197 : vector<8x128xf32>
    %200 = arith.divf %198, %199 : vector<8x128xf32>
    %201 = arith.mulf %192, %169 : vector<8x128xf32>
    %202 = arith.mulf %186, %194 : vector<8x128xf32>
    %203 = arith.addf %201, %202 : vector<8x128xf32>
    %204 = math.tanh %203 : vector<8x128xf32>
    %205 = arith.mulf %200, %204 : vector<8x128xf32>
    %206 = arith.index_cast %c5_i32 : i32 to index
    %c0_52 = arith.constant 0 : index
    %c0_53 = arith.constant 0 : index
    %207 = vector.load %arg6[%206, %c0_52, %c0_53] : memref<8x8x128xf32, #tpu.memory_space<vmem>>, vector<1x8x128xf32>
    %208 = vector.shape_cast %207 : vector<1x8x128xf32> to vector<8x128xf32>
    %209 = vector.shape_cast %205 : vector<8x128xf32> to vector<1x8x128xf32>
    tpu.vector_store %arg6[%206, %c0_52, %c0_53], %209 {strides = array<i32>} : memref<8x8x128xf32, #tpu.memory_space<vmem>>, vector<1x8x128xf32>,
    %c6_i32 = arith.constant 6 : i32
    %210 = arith.index_cast %c6_i32 : i32 to index
    %c0_54 = arith.constant 0 : index
    %c0_55 = arith.constant 0 : index
    %211 = vector.load %arg2[%210, %c0_54, %c0_55] : memref<8x8x512xf32, #tpu.memory_space<vmem>>, vector<1x8x512xf32>
    %212 = vector.shape_cast %211 : vector<1x8x512xf32> to vector<8x512xf32>
    %cst_56 = arith.constant dense<0.000000e+00> : vector<8x512xf32>
    %213 = tpu.matmul %205, %3, %cst_56 {dimension_numbers = #tpu.dot_dimension_numbers<[1], [0], [0], [1], [0, 0, 1, 1], [], []>} : vector<8x128xf32>, vector<128x512xf32>, vector<8x512xf32> -> vector<8x512xf32>
    %214 = arith.addf %212, %213 : vector<8x512xf32>
    %215 = vector.extract_strided_slice %214 {offsets = [0, 0], sizes = [8, 128], strides = [1, 1]} : vector<8x512xf32> to vector<8x128xf32>
    %216 = arith.negf %215 : vector<8x128xf32>
    %217 = math.exp %216 : vector<8x128xf32>
    %cst_57 = arith.constant 1.000000e+00 : f32
    %218 = vector.broadcast %cst_57 : f32 to vector<8x128xf32>
    %219 = arith.addf %218, %217 : vector<8x128xf32>
    %220 = arith.divf %218, %219 : vector<8x128xf32>
    %221 = vector.extract_strided_slice %214 {offsets = [0, 128], sizes = [8, 128], strides = [1, 1]} : vector<8x512xf32> to vector<8x128xf32>
    %222 = arith.negf %221 : vector<8x128xf32>
    %223 = math.exp %222 : vector<8x128xf32>
    %cst_58 = arith.constant 1.000000e+00 : f32
    %224 = vector.broadcast %cst_58 : f32 to vector<8x128xf32>
    %225 = arith.addf %224, %223 : vector<8x128xf32>
    %226 = arith.divf %224, %225 : vector<8x128xf32>
    %227 = vector.extract_strided_slice %214 {offsets = [0, 256], sizes = [8, 128], strides = [1, 1]} : vector<8x512xf32> to vector<8x128xf32>
    %228 = math.tanh %227 : vector<8x128xf32>
    %229 = vector.extract_strided_slice %214 {offsets = [0, 384], sizes = [8, 128], strides = [1, 1]} : vector<8x512xf32> to vector<8x128xf32>
    %230 = arith.negf %229 : vector<8x128xf32>
    %231 = math.exp %230 : vector<8x128xf32>
    %cst_59 = arith.constant 1.000000e+00 : f32
    %232 = vector.broadcast %cst_59 : f32 to vector<8x128xf32>
    %233 = arith.addf %232, %231 : vector<8x128xf32>
    %234 = arith.divf %232, %233 : vector<8x128xf32>
    %235 = arith.mulf %226, %203 : vector<8x128xf32>
    %236 = arith.mulf %220, %228 : vector<8x128xf32>
    %237 = arith.addf %235, %236 : vector<8x128xf32>
    %238 = math.tanh %237 : vector<8x128xf32>
    %239 = arith.mulf %234, %238 : vector<8x128xf32>
    %240 = arith.index_cast %c6_i32 : i32 to index
    %c0_60 = arith.constant 0 : index
    %c0_61 = arith.constant 0 : index
    %241 = vector.load %arg6[%240, %c0_60, %c0_61] : memref<8x8x128xf32, #tpu.memory_space<vmem>>, vector<1x8x128xf32>
    %242 = vector.shape_cast %241 : vector<1x8x128xf32> to vector<8x128xf32>
    %243 = vector.shape_cast %239 : vector<8x128xf32> to vector<1x8x128xf32>
    tpu.vector_store %arg6[%240, %c0_60, %c0_61], %243 {strides = array<i32>} : memref<8x8x128xf32, #tpu.memory_space<vmem>>, vector<1x8x128xf32>,
    %c7_i32 = arith.constant 7 : i32
    %244 = arith.index_cast %c7_i32 : i32 to index
    %c0_62 = arith.constant 0 : index
    %c0_63 = arith.constant 0 : index
    %245 = vector.load %arg2[%244, %c0_62, %c0_63] : memref<8x8x512xf32, #tpu.memory_space<vmem>>, vector<1x8x512xf32>
    %246 = vector.shape_cast %245 : vector<1x8x512xf32> to vector<8x512xf32>
    %cst_64 = arith.constant dense<0.000000e+00> : vector<8x512xf32>
    %247 = tpu.matmul %239, %3, %cst_64 {dimension_numbers = #tpu.dot_dimension_numbers<[1], [0], [0], [1], [0, 0, 1, 1], [], []>} : vector<8x128xf32>, vector<128x512xf32>, vector<8x512xf32> -> vector<8x512xf32>
    %248 = arith.addf %246, %247 : vector<8x512xf32>
    %249 = vector.extract_strided_slice %248 {offsets = [0, 0], sizes = [8, 128], strides = [1, 1]} : vector<8x512xf32> to vector<8x128xf32>
    %250 = arith.negf %249 : vector<8x128xf32>
    %251 = math.exp %250 : vector<8x128xf32>
    %cst_65 = arith.constant 1.000000e+00 : f32
    %252 = vector.broadcast %cst_65 : f32 to vector<8x128xf32>
    %253 = arith.addf %252, %251 : vector<8x128xf32>
    %254 = arith.divf %252, %253 : vector<8x128xf32>
    %255 = vector.extract_strided_slice %248 {offsets = [0, 128], sizes = [8, 128], strides = [1, 1]} : vector<8x512xf32> to vector<8x128xf32>
    %256 = arith.negf %255 : vector<8x128xf32>
    %257 = math.exp %256 : vector<8x128xf32>
    %cst_66 = arith.constant 1.000000e+00 : f32
    %258 = vector.broadcast %cst_66 : f32 to vector<8x128xf32>
    %259 = arith.addf %258, %257 : vector<8x128xf32>
    %260 = arith.divf %258, %259 : vector<8x128xf32>
    %261 = vector.extract_strided_slice %248 {offsets = [0, 256], sizes = [8, 128], strides = [1, 1]} : vector<8x512xf32> to vector<8x128xf32>
    %262 = math.tanh %261 : vector<8x128xf32>
    %263 = vector.extract_strided_slice %248 {offsets = [0, 384], sizes = [8, 128], strides = [1, 1]} : vector<8x512xf32> to vector<8x128xf32>
    %264 = arith.negf %263 : vector<8x128xf32>
    %265 = math.exp %264 : vector<8x128xf32>
    %cst_67 = arith.constant 1.000000e+00 : f32
    %266 = vector.broadcast %cst_67 : f32 to vector<8x128xf32>
    %267 = arith.addf %266, %265 : vector<8x128xf32>
    %268 = arith.divf %266, %267 : vector<8x128xf32>
    %269 = arith.mulf %260, %237 : vector<8x128xf32>
    %270 = arith.mulf %254, %262 : vector<8x128xf32>
    %271 = arith.addf %269, %270 : vector<8x128xf32>
    %272 = math.tanh %271 : vector<8x128xf32>
    %273 = arith.mulf %268, %272 : vector<8x128xf32>
    %274 = arith.index_cast %c7_i32 : i32 to index
    %c0_68 = arith.constant 0 : index
    %c0_69 = arith.constant 0 : index
    %275 = vector.load %arg6[%274, %c0_68, %c0_69] : memref<8x8x128xf32, #tpu.memory_space<vmem>>, vector<1x8x128xf32>
    %276 = vector.shape_cast %275 : vector<1x8x128xf32> to vector<8x128xf32>
    %277 = vector.shape_cast %273 : vector<8x128xf32> to vector<1x8x128xf32>
    tpu.vector_store %arg6[%274, %c0_68, %c0_69], %277 {strides = array<i32>} : memref<8x8x128xf32, #tpu.memory_space<vmem>>, vector<1x8x128xf32>,
    %c8_i32 = arith.constant 8 : i32
    %c0_70 = arith.constant 0 : index
    %c0_71 = arith.constant 0 : index
    %278 = vector.load %arg9[%c0_70, %c0_71] : memref<8x128xf32, #tpu.memory_space<vmem>>, vector<8x128xf32>
    tpu.vector_store %arg9[%c0_70, %c0_71], %273 {strides = array<i32>} : memref<8x128xf32, #tpu.memory_space<vmem>>, vector<8x128xf32>,
    %c0_72 = arith.constant 0 : index
    %c0_73 = arith.constant 0 : index
    %279 = vector.load %arg10[%c0_72, %c0_73] : memref<8x128xf32, #tpu.memory_space<vmem>>, vector<8x128xf32>
    tpu.vector_store %arg10[%c0_72, %c0_73], %271 {strides = array<i32>} : memref<8x128xf32, #tpu.memory_space<vmem>>, vector<8x128xf32>,
    %c0_i32_74 = arith.constant 0 : i32
    %280 = arith.cmpi eq, %arg1, %c0_i32_74 : i32
    %281 = arith.extui %280 : i1 to i32
    %c0_i32_75 = arith.constant 0 : i32
    %282 = arith.cmpi ne, %281, %c0_i32_75 : i32
    scf.if %282 {
      %c0_76 = arith.constant 0 : index
      %c0_77 = arith.constant 0 : index
      %c0_78 = arith.constant 0 : index
      %283 = vector.load %arg7[%c0_76, %c0_77, %c0_78] : memref<1x8x128xf32, #tpu.memory_space<vmem>>, vector<1x8x128xf32>
      %284 = vector.shape_cast %283 : vector<1x8x128xf32> to vector<8x128xf32>
      %285 = vector.shape_cast %273 : vector<8x128xf32> to vector<1x8x128xf32>
      tpu.vector_store %arg7[%c0_76, %c0_77, %c0_78], %285 {strides = array<i32>} : memref<1x8x128xf32, #tpu.memory_space<vmem>>, vector<1x8x128xf32>,
      %c0_79 = arith.constant 0 : index
      %c0_80 = arith.constant 0 : index
      %c0_81 = arith.constant 0 : index
      %286 = vector.load %arg8[%c0_79, %c0_80, %c0_81] : memref<1x8x128xf32, #tpu.memory_space<vmem>>, vector<1x8x128xf32>
      %287 = vector.shape_cast %286 : vector<1x8x128xf32> to vector<8x128xf32>
      %288 = vector.shape_cast %271 : vector<8x128xf32> to vector<1x8x128xf32>
      tpu.vector_store %arg8[%c0_79, %c0_80, %c0_81], %288 {strides = array<i32>} : memref<1x8x128xf32, #tpu.memory_space<vmem>>, vector<1x8x128xf32>,
    } else {
    }
    return
  }
  func.func @transform_0(%arg0: i32, %arg1: i32) -> (i32, i32, i32) {
    %c0_i32 = arith.constant 0 : i32
    %c0_i32_0 = arith.constant 0 : i32
    return %arg1, %arg0, %c0_i32 : i32, i32, i32
  }
  func.func @transform_1(%arg0: i32, %arg1: i32) -> (i32, i32) {
    %c0_i32 = arith.constant 0 : i32
    %c0_i32_0 = arith.constant 0 : i32
    %c0_i32_1 = arith.constant 0 : i32
    return %c0_i32, %c0_i32_0 : i32, i32
  }
  func.func @transform_2(%arg0: i32, %arg1: i32) -> (i32, i32, i32) {
    %c0_i32 = arith.constant 0 : i32
    %c0_i32_0 = arith.constant 0 : i32
    %c0_i32_1 = arith.constant 0 : i32
    return %c0_i32, %arg0, %c0_i32_0 : i32, i32, i32
  }
  func.func @transform_3(%arg0: i32, %arg1: i32) -> (i32, i32, i32) {
    %c0_i32 = arith.constant 0 : i32
    %c0_i32_0 = arith.constant 0 : i32
    %c0_i32_1 = arith.constant 0 : i32
    return %c0_i32, %arg0, %c0_i32_0 : i32, i32, i32
  }
  func.func @transform_4(%arg0: i32, %arg1: i32) -> (i32, i32, i32) {
    %c0_i32 = arith.constant 0 : i32
    %c0_i32_0 = arith.constant 0 : i32
    return %arg1, %arg0, %c0_i32 : i32, i32, i32
  }
  func.func @transform_5(%arg0: i32, %arg1: i32) -> (i32, i32, i32) {
    %c0_i32 = arith.constant 0 : i32
    %c0_i32_0 = arith.constant 0 : i32
    %c0_i32_1 = arith.constant 0 : i32
    return %c0_i32, %arg0, %c0_i32_0 : i32, i32, i32
  }
  func.func @transform_6(%arg0: i32, %arg1: i32) -> (i32, i32, i32) {
    %c0_i32 = arith.constant 0 : i32
    %c0_i32_0 = arith.constant 0 : i32
    %c0_i32_1 = arith.constant 0 : i32
    return %c0_i32, %arg0, %c0_i32_0 : i32, i32, i32
  }
}

</mosaic_0001>

<llo_original>
// kernel: tpu_custom_call.1
$region0: #{tpu_custom_call.1}
  #allocation0 [shape = 'u32[]', space=smem, size = 0x4, offset = 0x4, fixed_abs, tag = 'smem constant byte address 0x4 - core index']
  #allocation1 [shape = 'u32[144,128]{1,0:T(1,128)}', space=vmem, size = 0x12000, scoped, tag = 'internal scratch']
  #allocation2 [shape = 'f32[8,128]{1,0:T(8,128)}', space=vmem, size = 0x1000, scoped, tag = 'scratch operand']
  #allocation3 [shape = 'f32[8,128]{1,0:T(8,128)}', space=vmem, size = 0x1000, scoped, tag = 'scratch operand']
  %s0 = inlined_call_operand.hbm [shape: f32[8,8,512], index: 0, kind: input, shape index: {}]
  %s1 = inlined_call_operand.hbm [shape: f32[128,512], index: 1, kind: input, shape index: {}]
  %s2 = inlined_call_operand.hbm [shape: f32[1,8,128], index: 2, kind: input, shape index: {}]
  %s3 = inlined_call_operand.hbm [shape: f32[1,8,128], index: 3, kind: input, shape index: {}]
  %s4 = inlined_call_operand.hbm [shape: f32[8,8,128], index: 4, kind: output, shape index: {0}]
  %s5 = inlined_call_operand.hbm [shape: f32[1,8,128], index: 5, kind: output, shape index: {1}]
  %s6 = inlined_call_operand.hbm [shape: f32[1,8,128], index: 6, kind: output, shape index: {2}]
  %7 = xla_tuple %s4, %s5, %s6
  %s8 = sld [smem:[#allocation0]]
  $region66: #{tpu_custom_call.1} parent=0
    _
  %s10 = ssub.s32 1, %s8
  %s11 = scalar_select 0, %s10, %s8
  $region1: #{tpu_custom_call.1} parent=0
    #allocation4 [shape = 'u8[131072]{0}', space=vmem, size = 0x20000, scoped, tag = 'input window, operand 0, single buffered']
    #allocation5 [shape = 's32[1]{0}', space=sflag, size = 0x4, scoped, tag = 'scoped memory for tpu_custom_call.1']
    #allocation6 [shape = 's32[1]{0}', space=sflag, size = 0x4, scoped, tag = 'scoped memory for tpu_custom_call.1']
    #allocation7 [shape = 'u8[262144]{0}', space=vmem, size = 0x40000, scoped, tag = 'input window, operand 1, single buffered']
    #allocation8 [shape = 's32[1]{0}', space=sflag, size = 0x4, scoped, tag = 'scoped memory for tpu_custom_call.1']
    #allocation9 [shape = 'u8[4096]{0}', space=vmem, size = 0x1000, scoped, tag = 'input window, operand 2, single buffered']
    #allocation10 [shape = 'u8[4096]{0}', space=vmem, size = 0x1000, scoped, tag = 'input window, operand 3, single buffered']
    #allocation11 [shape = 's32[1]{0}', space=sflag, size = 0x4, scoped, tag = 'scoped memory for tpu_custom_call.1']
    #allocation12 [shape = 'u8[32768]{0}', space=vmem, size = 0x8000, scoped, tag = 'output window, operand 0, single buffered']
    #allocation13 [shape = 'u8[4096]{0}', space=vmem, size = 0x1000, scoped, tag = 'output window, operand 1, single buffered']
    #allocation14 [shape = 's32[1]{0}', space=sflag, size = 0x4, scoped, tag = 'scoped memory for tpu_custom_call.1']
    #allocation15 [shape = 'u8[4096]{0}', space=vmem, size = 0x1000, scoped, tag = 'output window, operand 2, single buffered']
    %12 = vsyncpa [#allocation5], 0
    %13 = vsyncpa [#allocation8], 0
    %14 = vsyncpa [#allocation11], 0
    %15 = vsyncpa [#allocation6], 0
    %16 = vsyncpa [#allocation14], 0
    // Predicated region
    $region2: #{tpu_custom_call.1} parent=1 // pred_check
      _
    $region3: #{tpu_custom_call.1} parent=1 // pred_check_branch
      %18 = sbr.rel (0) target = $region5
    $region4: #{tpu_custom_call.1} parent=1 // pred_region
      %s20 = ssub.s32 4096, 4096
      %21 = vsyncadd [#allocation5], %s20
      %s22 = sshll.u32 [#allocation4], 4
      %s23 = int_to_ptr.vmem [resolvable:$true] %s22
      %28 = dma.hbm_to_vmem [thread:$0]  %s0, 4096, %s23, [#allocation5], 512, 512, 32
    $region5: #{tpu_custom_call.1} parent=1 // pred_fallthru
      _
    // Predicated region
    $region6: #{tpu_custom_call.1} parent=1 // pred_check
      _
    $region7: #{tpu_custom_call.1} parent=1 // pred_check_branch
      %30 = sbr.rel (0) target = $region9
    $region8: #{tpu_custom_call.1} parent=1 // pred_region
      %s32 = ssub.s32 8192, 8192
      %33 = vsyncadd [#allocation8], %s32
      %s34 = sshll.u32 [#allocation7], 4
      %s35 = int_to_ptr.vmem [resolvable:$true] %s34
      %40 = dma.hbm_to_vmem [thread:$0]  %s1, 8192, %s35, [#allocation8], 512, 512, 32
    $region9: #{tpu_custom_call.1} parent=1 // pred_fallthru
      _
    // Predicated region
    $region10: #{tpu_custom_call.1} parent=1 // pred_check
      _
    $region11: #{tpu_custom_call.1} parent=1 // pred_check_branch
      %42 = sbr.rel (0) target = $region13
    $region12: #{tpu_custom_call.1} parent=1 // pred_region
      %s44 = ssub.s32 128, 128
      %45 = vsyncadd [#allocation8], %s44
      %s47 = sshll.u32 [#allocation9], 4
      %s48 = int_to_ptr.vmem [resolvable:$true] %s47
      %50 = dma.hbm_to_vmem [thread:$0]  %s2, 128, %s48, [#allocation8]
    $region13: #{tpu_custom_call.1} parent=1 // pred_fallthru
      _
    // Predicated region
    $region14: #{tpu_custom_call.1} parent=1 // pred_check
      _
    $region15: #{tpu_custom_call.1} parent=1 // pred_check_branch
      %52 = sbr.rel (0) target = $region17
    $region16: #{tpu_custom_call.1} parent=1 // pred_region
      %s54 = ssub.s32 128, 128
      %55 = vsyncadd [#allocation11], %s54
      %s57 = sshll.u32 [#allocation10], 4
      %s58 = int_to_ptr.vmem [resolvable:$true] %s57
      %60 = dma.hbm_to_vmem [thread:$0]  %s3, 128, %s58, [#allocation11]
    $region17: #{tpu_custom_call.1} parent=1 // pred_fallthru
      _
    // Predicated region
    $region18: #{tpu_custom_call.1} parent=1 // pred_check
      _
    $region19: #{tpu_custom_call.1} parent=1 // pred_check_branch
      %62 = sbr.rel (0) target = $region21
    $region20: #{tpu_custom_call.1} parent=1 // pred_region
      %63 = dma.done [#allocation5], 4096
    $region21: #{tpu_custom_call.1} parent=1 // pred_fallthru
      _
    // Predicated region
    $region22: #{tpu_custom_call.1} parent=1 // pred_check
      _
    $region23: #{tpu_custom_call.1} parent=1 // pred_check_branch
      %65 = sbr.rel (0) target = $region25
    $region24: #{tpu_custom_call.1} parent=1 // pred_region
      %66 = dma.done [#allocation8], 8192
    $region25: #{tpu_custom_call.1} parent=1 // pred_fallthru
      _
    // Predicated region
    $region26: #{tpu_custom_call.1} parent=1 // pred_check
      _
    $region27: #{tpu_custom_call.1} parent=1 // pred_check_branch
      %68 = sbr.rel (0) target = $region29
    $region28: #{tpu_custom_call.1} parent=1 // pred_region
      %69 = dma.done [#allocation8], 128
    $region29: #{tpu_custom_call.1} parent=1 // pred_fallthru
      _
    // Predicated region
    $region30: #{tpu_custom_call.1} parent=1 // pred_check
      _
    $region31: #{tpu_custom_call.1} parent=1 // pred_check_branch
      %71 = sbr.rel (0) target = $region33
    $region32: #{tpu_custom_call.1} parent=1 // pred_region
      %72 = dma.done [#allocation11], 128
    $region33: #{tpu_custom_call.1} parent=1 // pred_fallthru
      _
    %p73 = scmp.eq.s32.totalorder 0, 0
    // Predicated region
    $region34: #{tpu_custom_call.1} parent=1 // pred_check
      %p74 = pneg %p73
    $region35: #{tpu_custom_call.1} parent=1 // pred_check_branch
      %76 = sbr.rel (%p74) target = $region37
    $region36: #{tpu_custom_call.1} parent=1 // pred_region
      %v77 = vld [vmem:[#allocation9] sm:$0xff]
      %78 = vst [vmem:[#allocation2] sm:$0xff] %v77
      %v79 = vld [vmem:[#allocation10] sm:$0xff]
      %80 = vst [vmem:[#allocation3] sm:$0xff] %v79
    $region37: #{tpu_custom_call.1} parent=1 // pred_fallthru
      _
    %v81 = vld [vmem:[#allocation7] sm:$0xff]
    %v82 = vld [vmem:[#allocation7 + $0x8] sm:$0xff]
    %v83 = vld [vmem:[#allocation7 + $0x10] sm:$0xff]
    %v84 = vld [vmem:[#allocation7 + $0x18] sm:$0xff]
    %v85 = vld [vmem:[#allocation7 + $0x20] sm:$0xff]
    %v86 = vld [vmem:[#allocation7 + $0x28] sm:$0xff]
    %v87 = vld [vmem:[#allocation7 + $0x30] sm:$0xff]
    %v88 = vld [vmem:[#allocation7 + $0x38] sm:$0xff]
    %v89 = vld [vmem:[#allocation7 + $0x40] sm:$0xff]
    %v90 = vld [vmem:[#allocation7 + $0x48] sm:$0xff]
    %v91 = vld [vmem:[#allocation7 + $0x50] sm:$0xff]
    %v92 = vld [vmem:[#allocation7 + $0x58] sm:$0xff]
    %v93 = vld [vmem:[#allocation7 + $0x60] sm:$0xff]
    %v94 = vld [vmem:[#allocation7 + $0x68] sm:$0xff]
    %v95 = vld [vmem:[#allocation7 + $0x70] sm:$0xff]
    %v96 = vld [vmem:[#allocation7 + $0x78] sm:$0xff]
    %v97 = vld [vmem:[#allocation7 + $0x80] sm:$0xff]
    %v98 = vld [vmem:[#allocation7 + $0x88] sm:$0xff]
    %v99 = vld [vmem:[#allocation7 + $0x90] sm:$0xff]
    %v100 = vld [vmem:[#allocation7 + $0x98] sm:$0xff]
    %v101 = vld [vmem:[#allocation7 + $0xa0] sm:$0xff]
    %v102 = vld [vmem:[#allocation7 + $0xa8] sm:$0xff]
    %v103 = vld [vmem:[#allocation7 + $0xb0] sm:$0xff]
    %v104 = vld [vmem:[#allocation7 + $0xb8] sm:$0xff]
    %v105 = vld [vmem:[#allocation7 + $0xc0] sm:$0xff]
    %v106 = vld [vmem:[#allocation7 + $0xc8] sm:$0xff]
    %v107 = vld [vmem:[#allocation7 + $0xd0] sm:$0xff]
    %v108 = vld [vmem:[#allocation7 + $0xd8] sm:$0xff]
    %v109 = vld [vmem:[#allocation7 + $0xe0] sm:$0xff]
    %v110 = vld [vmem:[#allocation7 + $0xe8] sm:$0xff]
    %v111 = vld [vmem:[#allocation7 + $0xf0] sm:$0xff]
    %v112 = vld [vmem:[#allocation7 + $0xf8] sm:$0xff]
    %v113 = vld [vmem:[#allocation7 + $0x100] sm:$0xff]
    %v114 = vld [vmem:[#allocation7 + $0x108] sm:$0xff]
    %v115 = vld [vmem:[#allocation7 + $0x110] sm:$0xff]
    %v116 = vld [vmem:[#allocation7 + $0x118] sm:$0xff]
    %v117 = vld [vmem:[#allocation7 + $0x120] sm:$0xff]
    %v118 = vld [vmem:[#allocation7 + $0x128] sm:$0xff]
    %v119 = vld [vmem:[#allocation7 + $0x130] sm:$0xff]
    %v120 = vld [vmem:[#allocation7 + $0x138] sm:$0xff]
    %v121 = vld [vmem:[#allocation7 + $0x140] sm:$0xff]
    %v122 = vld [vmem:[#allocation7 + $0x148] sm:$0xff]
    %v123 = vld [vmem:[#allocation7 + $0x150] sm:$0xff]
    %v124 = vld [vmem:[#allocation7 + $0x158] sm:$0xff]
    %v125 = vld [vmem:[#allocation7 + $0x160] sm:$0xff]
    %v126 = vld [vmem:[#allocation7 + $0x168] sm:$0xff]
    %v127 = vld [vmem:[#allocation7 + $0x170] sm:$0xff]
    %v128 = vld [vmem:[#allocation7 + $0x178] sm:$0xff]
    %v129 = vld [vmem:[#allocation7 + $0x180] sm:$0xff]
    %v130 = vld [vmem:[#allocation7 + $0x188] sm:$0xff]
    %v131 = vld [vmem:[#allocation7 + $0x190] sm:$0xff]
    %v132 = vld [vmem:[#allocation7 + $0x198] sm:$0xff]
    %v133 = vld [vmem:[#allocation7 + $0x1a0] sm:$0xff]
    %v134 = vld [vmem:[#allocation7 + $0x1a8] sm:$0xff]
    %v135 = vld [vmem:[#allocation7 + $0x1b0] sm:$0xff]
    %v136 = vld [vmem:[#allocation7 + $0x1b8] sm:$0xff]
    %v137 = vld [vmem:[#allocation7 + $0x1c0] sm:$0xff]
    %v138 = vld [vmem:[#allocation7 + $0x1c8] sm:$0xff]
    %v139 = vld [vmem:[#allocation7 + $0x1d0] sm:$0xff]
    %v140 = vld [vmem:[#allocation7 + $0x1d8] sm:$0xff]
    %v141 = vld [vmem:[#allocation7 + $0x1e0] sm:$0xff]
    %v142 = vld [vmem:[#allocation7 + $0x1e8] sm:$0xff]
    %v143 = vld [vmem:[#allocation7 + $0x1f0] sm:$0xff]
    %v144 = vld [vmem:[#allocation7 + $0x1f8] sm:$0xff]
    %v145 = vld [vmem:[#allocation2] sm:$0xff]
    %v146 = vld [vmem:[#allocation3] sm:$0xff]
    %v147 = vld [vmem:[#allocation4] sm:$0xff]
    %v148 = vld [vmem:[#allocation4 + $0x8] sm:$0xff]
    %v149 = vld [vmem:[#allocation4 + $0x10] sm:$0xff]
    %v150 = vld [vmem:[#allocation4 + $0x18] sm:$0xff]
    %151 = vmatprep.subr.mxu0 %v142
    %152 = vmatpush1.msra.mxu0 %v141
    %153 = vmatprep.subr.mxu0 %v138
    %154 = vmatpush1.msra.mxu0 %v137
    %155 = vmatprep.subr.mxu0 %v134
    %156 = vmatpush1.msra.mxu0 %v133
    %157 = vmatprep.subr.mxu0 %v130
    %158 = vmatpush1.msra.mxu0 %v129
    %159 = vmatprep.subr.mxu0 %v126
    %160 = vmatpush1.msra.mxu0 %v125
    %161 = vmatprep.subr.mxu0 %v122
    %162 = vmatpush1.msra.mxu0 %v121
    %163 = vmatprep.subr.mxu0 %v118
    %164 = vmatpush1.msra.mxu0 %v117
    %165 = vmatprep.subr.mxu0 %v114
    %166 = vmatpush1.msra.mxu0 %v113
    %167 = vmatprep.subr.mxu0 %v110
    %168 = vmatpush1.msra.mxu0 %v109
    %169 = vmatprep.subr.mxu0 %v106
    %170 = vmatpush1.msra.mxu0 %v105
    %171 = vmatprep.subr.mxu0 %v102
    %172 = vmatpush1.msra.mxu0 %v101
    %173 = vmatprep.subr.mxu0 %v98
    %174 = vmatpush1.msra.mxu0 %v97
    %175 = vmatprep.subr.mxu0 %v94
    %176 = vmatpush1.msra.mxu0 %v93
    %177 = vmatprep.subr.mxu0 %v90
    %178 = vmatpush1.msra.mxu0 %v89
    %179 = vmatprep.subr.mxu0 %v86
    %180 = vmatpush1.msra.mxu0 %v85
    %181 = vmatprep.subr.mxu0 %v82
    %182 = vmatpush1.msra.mxu0 %v81
    %183 = vmatprep.subr.mxu0 0.0
    %184 = vmatpush2.msra.mxu0 0.0
    %185 = vmatprep.subr.mxu0 0.0
    %186 = vmatpush2.msra.mxu0 0.0
    %187 = vmatprep.subr.mxu0 0.0
    %188 = vmatpush2.msra.mxu0 0.0
    %189 = vmatprep.subr.mxu0 0.0
    %190 = vmatpush2.msra.mxu0 0.0
    %191 = vmatprep.subr.mxu0 0.0
    %192 = vmatpush2.msra.mxu0 0.0
    %193 = vmatprep.subr.mxu0 0.0
    %194 = vmatpush2.msra.mxu0 0.0
    %195 = vmatprep.subr.mxu0 0.0
    %196 = vmatpush2.msra.mxu0 0.0
    %197 = vmatprep.subr.mxu0 0.0
    %198 = vmatpush2.msra.mxu0 0.0
    %199 = vmatprep.subr.mxu0 0.0
    %200 = vmatpush2.msra.mxu0 0.0
    %201 = vmatprep.subr.mxu0 0.0
    %202 = vmatpush2.msra.mxu0 0.0
    %203 = vmatprep.subr.mxu0 0.0
    %204 = vmatpush2.msra.mxu0 0.0
    %205 = vmatprep.subr.mxu0 0.0
    %206 = vmatpush2.msra.mxu0 0.0
    %207 = vmatprep.subr.mxu0 0.0
    %208 = vmatpush2.msra.mxu0 0.0
    %209 = vmatprep.subr.mxu0 0.0
    %210 = vmatpush2.msra.mxu0 0.0
    %211 = vmatprep.subr.mxu0 0.0
    %212 = vmatpush2.msra.mxu0 0.0
    %213 = vmatprep.subr.mxu0 0.0
    %214 = vmatpush2.msra.mxu0 0.0
    %215 = vmatprep.mubr.f32.mxu0 0.0
    %216 = vmatmul.mubr.f32.gmra.mxu0 %v145
    %v217 = vpop.f32.mrf.mxu0
    %v218 = vadd.f32 0.0, %v217
    %v219 = vpop.f32.mrf.mxu0
    %v220 = vadd.f32 0.0, %v219
    %221 = vdwg.mxu0
    %222 = vmatprep.subr.mxu0 %v144
    %223 = vmatpush1.msra.mxu0 %v143
    %224 = vmatprep.subr.mxu0 %v140
    %225 = vmatpush1.msra.mxu0 %v139
    %226 = vmatprep.subr.mxu0 %v136
    %227 = vmatpush1.msra.mxu0 %v135
    %228 = vmatprep.subr.mxu0 %v132
    %229 = vmatpush1.msra.mxu0 %v131
    %230 = vmatprep.subr.mxu0 %v128
    %231 = vmatpush1.msra.mxu0 %v127
    %232 = vmatprep.subr.mxu0 %v124
    %233 = vmatpush1.msra.mxu0 %v123
    %234 = vmatprep.subr.mxu0 %v120
    %235 = vmatpush1.msra.mxu0 %v119
    %236 = vmatprep.subr.mxu0 %v116
    %237 = vmatpush1.msra.mxu0 %v115
    %238 = vmatprep.subr.mxu0 %v112
    %239 = vmatpush1.msra.mxu0 %v111
    %240 = vmatprep.subr.mxu0 %v108
    %241 = vmatpush1.msra.mxu0 %v107
    %242 = vmatprep.subr.mxu0 %v104
    %243 = vmatpush1.msra.mxu0 %v103
    %244 = vmatprep.subr.mxu0 %v100
    %245 = vmatpush1.msra.mxu0 %v99
    %246 = vmatprep.subr.mxu0 %v96
    %247 = vmatpush1.msra.mxu0 %v95
    %248 = vmatprep.subr.mxu0 %v92
    %249 = vmatpush1.msra.mxu0 %v91
    %250 = vmatprep.subr.mxu0 %v88
    %251 = vmatpush1.msra.mxu0 %v87
    %252 = vmatprep.subr.mxu0 %v84
    %253 = vmatpush1.msra.mxu0 %v83
    %254 = vmatprep.subr.mxu0 0.0
    %255 = vmatpush2.msra.mxu0 0.0
    %256 = vmatprep.subr.mxu0 0.0
    %257 = vmatpush2.msra.mxu0 0.0
    %258 = vmatprep.subr.mxu0 0.0
    %259 = vmatpush2.msra.mxu0 0.0
    %260 = vmatprep.subr.mxu0 0.0
    %261 = vmatpush2.msra.mxu0 0.0
    %262 = vmatprep.subr.mxu0 0.0
    %263 = vmatpush2.msra.mxu0 0.0
    %264 = vmatprep.subr.mxu0 0.0
    %265 = vmatpush2.msra.mxu0 0.0
    %266 = vmatprep.subr.mxu0 0.0
    %267 = vmatpush2.msra.mxu0 0.0
    %268 = vmatprep.subr.mxu0 0.0
    %269 = vmatpush2.msra.mxu0 0.0
    %270 = vmatprep.subr.mxu0 0.0
    %271 = vmatpush2.msra.mxu0 0.0
    %272 = vmatprep.subr.mxu0 0.0
    %273 = vmatpush2.msra.mxu0 0.0
    %274 = vmatprep.subr.mxu0 0.0
    %275 = vmatpush2.msra.mxu0 0.0
    %276 = vmatprep.subr.mxu0 0.0
    %277 = vmatpush2.msra.mxu0 0.0
    %278 = vmatprep.subr.mxu0 0.0
    %279 = vmatpush2.msra.mxu0 0.0
    %280 = vmatprep.subr.mxu0 0.0
    %281 = vmatpush2.msra.mxu0 0.0
    %282 = vmatprep.subr.mxu0 0.0
    %283 = vmatpush2.msra.mxu0 0.0
    %284 = vmatprep.subr.mxu0 0.0
    %285 = vmatpush2.msra.mxu0 0.0
    %286 = vmatprep.mubr.f32.mxu0 0.0
    %287 = vmatmul.mubr.f32.gmra.mxu0 %v145
    %v288 = vpop.f32.mrf.mxu0
    %v289 = vadd.f32 0.0, %v288
    %v290 = vpop.f32.mrf.mxu0
    %v291 = vadd.f32 0.0, %v290
    %292 = vdwg.mxu0
    %v293 = vadd.f32 %v147, %v218
    %v294 = vadd.f32 %v148, %v220
    %v295 = vadd.f32 %v149, %v289
    %v296 = vadd.f32 %v150, %v291
    %v297 = vxor.u32 %v293, 2147483648
    %v298 = vmul.f32 %v297, 1.442695
    %v299 = vpow.pop %v298
    %v300 = vadd.f32 %v299, 1.0
    %v301 = vrcp.pop %v300
    %v302 = vmul.f32 1.0, %v301
    %v303 = vxor.u32 %v294, 2147483648
    %v304 = vmul.f32 %v303, 1.442695
    %v305 = vpow.pop %v304
    %v306 = vadd.f32 %v305, 1.0
    %v307 = vrcp.pop %v306
    %v308 = vmul.f32 1.0, %v307
    %v309 = vtanh.pop %v295
    %v310 = vxor.u32 %v296, 2147483648
    %v311 = vmul.f32 %v310, 1.442695
    %v312 = vpow.pop %v311
    %v313 = vadd.f32 %v312, 1.0
    %v314 = vrcp.pop %v313
    %v315 = vmul.f32 1.0, %v314
    %v316 = vmul.f32 %v308, %v146
    %v317 = vmul.f32 %v302, %v309
    %v318 = vadd.f32 %v316, %v317
    %v319 = vtanh.pop %v318
    %v320 = vmul.f32 %v315, %v319
    %321 = vst [vmem:[#allocation12] sm:$0xff] %v320
    %s322 = scalar_lea.vmem [#allocation4], 32
    %v323 = vld [vmem:[%s322] sm:$0xff]
    %v324 = vld [vmem:[%s322 + $0x8] sm:$0xff]
    %v325 = vld [vmem:[%s322 + $0x10] sm:$0xff]
    %v326 = vld [vmem:[%s322 + $0x18] sm:$0xff]
    %327 = vmatprep.subr.mxu0 %v142
    %328 = vmatpush1.msra.mxu0 %v141
    %329 = vmatprep.subr.mxu0 %v138
    %330 = vmatpush1.msra.mxu0 %v137
    %331 = vmatprep.subr.mxu0 %v134
    %332 = vmatpush1.msra.mxu0 %v133
    %333 = vmatprep.subr.mxu0 %v130
    %334 = vmatpush1.msra.mxu0 %v129
    %335 = vmatprep.subr.mxu0 %v126
    %336 = vmatpush1.msra.mxu0 %v125
    %337 = vmatprep.subr.mxu0 %v122
    %338 = vmatpush1.msra.mxu0 %v121
    %339 = vmatprep.subr.mxu0 %v118
    %340 = vmatpush1.msra.mxu0 %v117
    %341 = vmatprep.subr.mxu0 %v114
    %342 = vmatpush1.msra.mxu0 %v113
    %343 = vmatprep.subr.mxu0 %v110
    %344 = vmatpush1.msra.mxu0 %v109
    %345 = vmatprep.subr.mxu0 %v106
    %346 = vmatpush1.msra.mxu0 %v105
    %347 = vmatprep.subr.mxu0 %v102
    %348 = vmatpush1.msra.mxu0 %v101
    %349 = vmatprep.subr.mxu0 %v98
    %350 = vmatpush1.msra.mxu0 %v97
    %351 = vmatprep.subr.mxu0 %v94
    %352 = vmatpush1.msra.mxu0 %v93
    %353 = vmatprep.subr.mxu0 %v90
    %354 = vmatpush1.msra.mxu0 %v89
    %355 = vmatprep.subr.mxu0 %v86
    %356 = vmatpush1.msra.mxu0 %v85
    %357 = vmatprep.subr.mxu0 %v82
    %358 = vmatpush1.msra.mxu0 %v81
    %359 = vmatprep.subr.mxu0 0.0
    %360 = vmatpush2.msra.mxu0 0.0
    %361 = vmatprep.subr.mxu0 0.0
    %362 = vmatpush2.msra.mxu0 0.0
    %363 = vmatprep.subr.mxu0 0.0
    %364 = vmatpush2.msra.mxu0 0.0
    %365 = vmatprep.subr.mxu0 0.0
    %366 = vmatpush2.msra.mxu0 0.0
    %367 = vmatprep.subr.mxu0 0.0
    %368 = vmatpush2.msra.mxu0 0.0
    %369 = vmatprep.subr.mxu0 0.0
    %370 = vmatpush2.msra.mxu0 0.0
    %371 = vmatprep.subr.mxu0 0.0
    %372 = vmatpush2.msra.mxu0 0.0
    %373 = vmatprep.subr.mxu0 0.0
    %374 = vmatpush2.msra.mxu0 0.0
    %375 = vmatprep.subr.mxu0 0.0
    %376 = vmatpush2.msra.mxu0 0.0
    %377 = vmatprep.subr.mxu0 0.0
    %378 = vmatpush2.msra.mxu0 0.0
    %379 = vmatprep.subr.mxu0 0.0
    %380 = vmatpush2.msra.mxu0 0.0
    %381 = vmatprep.subr.mxu0 0.0
    %382 = vmatpush2.msra.mxu0 0.0
    %383 = vmatprep.subr.mxu0 0.0
    %384 = vmatpush2.msra.mxu0 0.0
    %385 = vmatprep.subr.mxu0 0.0
    %386 = vmatpush2.msra.mxu0 0.0
    %387 = vmatprep.subr.mxu0 0.0
    %388 = vmatpush2.msra.mxu0 0.0
    %389 = vmatprep.subr.mxu0 0.0
    %390 = vmatpush2.msra.mxu0 0.0
    %391 = vmatprep.mubr.f32.mxu0 0.0
    %392 = vmatmul.mubr.f32.gmra.mxu0 %v320
    %v393 = vpop.f32.mrf.mxu0
    %v394 = vadd.f32 0.0, %v393
    %v395 = vpop.f32.mrf.mxu0
    %v396 = vadd.f32 0.0, %v395
    %397 = vdwg.mxu0
    %398 = vmatprep.subr.mxu0 %v144
    %399 = vmatpush1.msra.mxu0 %v143
    %400 = vmatprep.subr.mxu0 %v140
    %401 = vmatpush1.msra.mxu0 %v139
    %402 = vmatprep.subr.mxu0 %v136
    %403 = vmatpush1.msra.mxu0 %v135
    %404 = vmatprep.subr.mxu0 %v132
    %405 = vmatpush1.msra.mxu0 %v131
    %406 = vmatprep.subr.mxu0 %v128
    %407 = vmatpush1.msra.mxu0 %v127
    %408 = vmatprep.subr.mxu0 %v124
    %409 = vmatpush1.msra.mxu0 %v123
    %410 = vmatprep.subr.mxu0 %v120
    %411 = vmatpush1.msra.mxu0 %v119
    %412 = vmatprep.subr.mxu0 %v116
    %413 = vmatpush1.msra.mxu0 %v115
    %414 = vmatprep.subr.mxu0 %v112
    %415 = vmatpush1.msra.mxu0 %v111
    %416 = vmatprep.subr.mxu0 %v108
    %417 = vmatpush1.msra.mxu0 %v107
    %418 = vmatprep.subr.mxu0 %v104
    %419 = vmatpush1.msra.mxu0 %v103
    %420 = vmatprep.subr.mxu0 %v100
    %421 = vmatpush1.msra.mxu0 %v99
    %422 = vmatprep.subr.mxu0 %v96
    %423 = vmatpush1.msra.mxu0 %v95
    %424 = vmatprep.subr.mxu0 %v92
    %425 = vmatpush1.msra.mxu0 %v91
    %426 = vmatprep.subr.mxu0 %v88
    %427 = vmatpush1.msra.mxu0 %v87
    %428 = vmatprep.subr.mxu0 %v84
    %429 = vmatpush1.msra.mxu0 %v83
    %430 = vmatprep.subr.mxu0 0.0
    %431 = vmatpush2.msra.mxu0 0.0
    %432 = vmatprep.subr.mxu0 0.0
    %433 = vmatpush2.msra.mxu0 0.0
    %434 = vmatprep.subr.mxu0 0.0
    %435 = vmatpush2.msra.mxu0 0.0
    %436 = vmatprep.subr.mxu0 0.0
    %437 = vmatpush2.msra.mxu0 0.0
    %438 = vmatprep.subr.mxu0 0.0
    %439 = vmatpush2.msra.mxu0 0.0
    %440 = vmatprep.subr.mxu0 0.0
    %441 = vmatpush2.msra.mxu0 0.0
    %442 = vmatprep.subr.mxu0 0.0
    %443 = vmatpush2.msra.mxu0 0.0
    %444 = vmatprep.subr.mxu0 0.0
    %445 = vmatpush2.msra.mxu0 0.0
    %446 = vmatprep.subr.mxu0 0.0
    %447 = vmatpush2.msra.mxu0 0.0
    %448 = vmatprep.subr.mxu0 0.0
    %449 = vmatpush2.msra.mxu0 0.0
    %450 = vmatprep.subr.mxu0 0.0
    %451 = vmatpush2.msra.mxu0 0.0
    %452 = vmatprep.subr.mxu0 0.0
    %453 = vmatpush2.msra.mxu0 0.0
    %454 = vmatprep.subr.mxu0 0.0
    %455 = vmatpush2.msra.mxu0 0.0
    %456 = vmatprep.subr.mxu0 0.0
    %457 = vmatpush2.msra.mxu0 0.0
    %458 = vmatprep.subr.mxu0 0.0
    %459 = vmatpush2.msra.mxu0 0.0
    %460 = vmatprep.subr.mxu0 0.0
    %461 = vmatpush2.msra.mxu0 0.0
    %462 = vmatprep.mubr.f32.mxu0 0.0
    %463 = vmatmul.mubr.f32.gmra.mxu0 %v320
    %v464 = vpop.f32.mrf.mxu0
    %v465 = vadd.f32 0.0, %v464
    %v466 = vpop.f32.mrf.mxu0
    %v467 = vadd.f32 0.0, %v466
    %468 = vdwg.mxu0
    %v469 = vadd.f32 %v323, %v394
    %v470 = vadd.f32 %v324, %v396
    %v471 = vadd.f32 %v325, %v465
    %v472 = vadd.f32 %v326, %v467
    %v473 = vxor.u32 %v469, 2147483648
    %v474 = vmul.f32 %v473, 1.442695
    %v475 = vpow.pop %v474
    %v476 = vadd.f32 %v475, 1.0
    %v477 = vrcp.pop %v476
    %v478 = vmul.f32 1.0, %v477
    %v479 = vxor.u32 %v470, 2147483648
    %v480 = vmul.f32 %v479, 1.442695
    %v481 = vpow.pop %v480
    %v482 = vadd.f32 %v481, 1.0
    %v483 = vrcp.pop %v482
    %v484 = vmul.f32 1.0, %v483
    %v485 = vtanh.pop %v471
    %v486 = vxor.u32 %v472, 2147483648
    %v487 = vmul.f32 %v486, 1.442695
    %v488 = vpow.pop %v487
    %v489 = vadd.f32 %v488, 1.0
    %v490 = vrcp.pop %v489
    %v491 = vmul.f32 1.0, %v490
    %v492 = vmul.f32 %v484, %v318
    %v493 = vmul.f32 %v478, %v485
    %v494 = vadd.f32 %v492, %v493
    %v495 = vtanh.pop %v494
    %v496 = vmul.f32 %v491, %v495
    %s497 = scalar_lea.vmem [#allocation12], 8
    %498 = vst [vmem:[%s497] sm:$0xff] %v496
    %s499 = scalar_lea.vmem [#allocation4], 64
    %v500 = vld [vmem:[%s499] sm:$0xff]
    %v501 = vld [vmem:[%s499 + $0x8] sm:$0xff]
    %v502 = vld [vmem:[%s499 + $0x10] sm:$0xff]
    %v503 = vld [vmem:[%s499 + $0x18] sm:$0xff]
    %504 = vmatprep.subr.mxu0 %v142
    %505 = vmatpush1.msra.mxu0 %v141
    %506 = vmatprep.subr.mxu0 %v138
    %507 = vmatpush1.msra.mxu0 %v137
    %508 = vmatprep.subr.mxu0 %v134
    %509 = vmatpush1.msra.mxu0 %v133
    %510 = vmatprep.subr.mxu0 %v130
    %511 = vmatpush1.msra.mxu0 %v129
    %512 = vmatprep.subr.mxu0 %v126
    %513 = vmatpush1.msra.mxu0 %v125
    %514 = vmatprep.subr.mxu0 %v122
    %515 = vmatpush1.msra.mxu0 %v121
    %516 = vmatprep.subr.mxu0 %v118
    %517 = vmatpush1.msra.mxu0 %v117
    %518 = vmatprep.subr.mxu0 %v114
    %519 = vmatpush1.msra.mxu0 %v113
    %520 = vmatprep.subr.mxu0 %v110
    %521 = vmatpush1.msra.mxu0 %v109
    %522 = vmatprep.subr.mxu0 %v106
    %523 = vmatpush1.msra.mxu0 %v105
    %524 = vmatprep.subr.mxu0 %v102
    %525 = vmatpush1.msra.mxu0 %v101
    %526 = vmatprep.subr.mxu0 %v98
    %527 = vmatpush1.msra.mxu0 %v97
    %528 = vmatprep.subr.mxu0 %v94
    %529 = vmatpush1.msra.mxu0 %v93
    %530 = vmatprep.subr.mxu0 %v90
    %531 = vmatpush1.msra.mxu0 %v89
    %532 = vmatprep.subr.mxu0 %v86
    %533 = vmatpush1.msra.mxu0 %v85
    %534 = vmatprep.subr.mxu0 %v82
    %535 = vmatpush1.msra.mxu0 %v81
    %536 = vmatprep.subr.mxu0 0.0
    %537 = vmatpush2.msra.mxu0 0.0
    %538 = vmatprep.subr.mxu0 0.0
    %539 = vmatpush2.msra.mxu0 0.0
    %540 = vmatprep.subr.mxu0 0.0
    %541 = vmatpush2.msra.mxu0 0.0
    %542 = vmatprep.subr.mxu0 0.0
    %543 = vmatpush2.msra.mxu0 0.0
    %544 = vmatprep.subr.mxu0 0.0
    %545 = vmatpush2.msra.mxu0 0.0
    %546 = vmatprep.subr.mxu0 0.0
    %547 = vmatpush2.msra.mxu0 0.0
    %548 = vmatprep.subr.mxu0 0.0
    %549 = vmatpush2.msra.mxu0 0.0
    %550 = vmatprep.subr.mxu0 0.0
    %551 = vmatpush2.msra.mxu0 0.0
    %552 = vmatprep.subr.mxu0 0.0
    %553 = vmatpush2.msra.mxu0 0.0
    %554 = vmatprep.subr.mxu0 0.0
    %555 = vmatpush2.msra.mxu0 0.0
    %556 = vmatprep.subr.mxu0 0.0
    %557 = vmatpush2.msra.mxu0 0.0
    %558 = vmatprep.subr.mxu0 0.0
    %559 = vmatpush2.msra.mxu0 0.0
    %560 = vmatprep.subr.mxu0 0.0
    %561 = vmatpush2.msra.mxu0 0.0
    %562 = vmatprep.subr.mxu0 0.0
    %563 = vmatpush2.msra.mxu0 0.0
    %564 = vmatprep.subr.mxu0 0.0
    %565 = vmatpush2.msra.mxu0 0.0
    %566 = vmatprep.subr.mxu0 0.0
    %567 = vmatpush2.msra.mxu0 0.0
    %568 = vmatprep.mubr.f32.mxu0 0.0
    %569 = vmatmul.mubr.f32.gmra.mxu0 %v496
    %v570 = vpop.f32.mrf.mxu0
    %v571 = vadd.f32 0.0, %v570
    %v572 = vpop.f32.mrf.mxu0
    %v573 = vadd.f32 0.0, %v572
    %574 = vdwg.mxu0
    %575 = vmatprep.subr.mxu0 %v144
    %576 = vmatpush1.msra.mxu0 %v143
    %577 = vmatprep.subr.mxu0 %v140
    %578 = vmatpush1.msra.mxu0 %v139
    %579 = vmatprep.subr.mxu0 %v136
    %580 = vmatpush1.msra.mxu0 %v135
    %581 = vmatprep.subr.mxu0 %v132
    %582 = vmatpush1.msra.mxu0 %v131
    %583 = vmatprep.subr.mxu0 %v128
    %584 = vmatpush1.msra.mxu0 %v127
    %585 = vmatprep.subr.mxu0 %v124
    %586 = vmatpush1.msra.mxu0 %v123
    %587 = vmatprep.subr.mxu0 %v120
    %588 = vmatpush1.msra.mxu0 %v119
    %589 = vmatprep.subr.mxu0 %v116
    %590 = vmatpush1.msra.mxu0 %v115
    %591 = vmatprep.subr.mxu0 %v112
    %592 = vmatpush1.msra.mxu0 %v111
    %593 = vmatprep.subr.mxu0 %v108
    %594 = vmatpush1.msra.mxu0 %v107
    %595 = vmatprep.subr.mxu0 %v104
    %596 = vmatpush1.msra.mxu0 %v103
    %597 = vmatprep.subr.mxu0 %v100
    %598 = vmatpush1.msra.mxu0 %v99
    %599 = vmatprep.subr.mxu0 %v96
    %600 = vmatpush1.msra.mxu0 %v95
    %601 = vmatprep.subr.mxu0 %v92
    %602 = vmatpush1.msra.mxu0 %v91
    %603 = vmatprep.subr.mxu0 %v88
    %604 = vmatpush1.msra.mxu0 %v87
    %605 = vmatprep.subr.mxu0 %v84
    %606 = vmatpush1.msra.mxu0 %v83
    %607 = vmatprep.subr.mxu0 0.0
    %608 = vmatpush2.msra.mxu0 0.0
    %609 = vmatprep.subr.mxu0 0.0
    %610 = vmatpush2.msra.mxu0 0.0
    %611 = vmatprep.subr.mxu0 0.0
    %612 = vmatpush2.msra.mxu0 0.0
    %613 = vmatprep.subr.mxu0 0.0
    %614 = vmatpush2.msra.mxu0 0.0
    %615 = vmatprep.subr.mxu0 0.0
    %616 = vmatpush2.msra.mxu0 0.0
    %617 = vmatprep.subr.mxu0 0.0
    %618 = vmatpush2.msra.mxu0 0.0
    %619 = vmatprep.subr.mxu0 0.0
    %620 = vmatpush2.msra.mxu0 0.0
    %621 = vmatprep.subr.mxu0 0.0
    %622 = vmatpush2.msra.mxu0 0.0
    %623 = vmatprep.subr.mxu0 0.0
    %624 = vmatpush2.msra.mxu0 0.0
    %625 = vmatprep.subr.mxu0 0.0
    %626 = vmatpush2.msra.mxu0 0.0
    %627 = vmatprep.subr.mxu0 0.0
    %628 = vmatpush2.msra.mxu0 0.0
    %629 = vmatprep.subr.mxu0 0.0
    %630 = vmatpush2.msra.mxu0 0.0
    %631 = vmatprep.subr.mxu0 0.0
    %632 = vmatpush2.msra.mxu0 0.0
    %633 = vmatprep.subr.mxu0 0.0
    %634 = vmatpush2.msra.mxu0 0.0
    %635 = vmatprep.subr.mxu0 0.0
    %636 = vmatpush2.msra.mxu0 0.0
    %637 = vmatprep.subr.mxu0 0.0
    %638 = vmatpush2.msra.mxu0 0.0
    %639 = vmatprep.mubr.f32.mxu0 0.0
    %640 = vmatmul.mubr.f32.gmra.mxu0 %v496
    %v641 = vpop.f32.mrf.mxu0
    %v642 = vadd.f32 0.0, %v641
    %v643 = vpop.f32.mrf.mxu0
    %v644 = vadd.f32 0.0, %v643
    %645 = vdwg.mxu0
    %v646 = vadd.f32 %v500, %v571
    %v647 = vadd.f32 %v501, %v573
    %v648 = vadd.f32 %v502, %v642
    %v649 = vadd.f32 %v503, %v644
    %v650 = vxor.u32 %v646, 2147483648
    %v651 = vmul.f32 %v650, 1.442695
    %v652 = vpow.pop %v651
    %v653 = vadd.f32 %v652, 1.0
    %v654 = vrcp.pop %v653
    %v655 = vmul.f32 1.0, %v654
    %v656 = vxor.u32 %v647, 2147483648
    %v657 = vmul.f32 %v656, 1.442695
    %v658 = vpow.pop %v657
    %v659 = vadd.f32 %v658, 1.0
    %v660 = vrcp.pop %v659
    %v661 = vmul.f32 1.0, %v660
    %v662 = vtanh.pop %v648
    %v663 = vxor.u32 %v649, 2147483648
    %v664 = vmul.f32 %v663, 1.442695
    %v665 = vpow.pop %v664
    %v666 = vadd.f32 %v665, 1.0
    %v667 = vrcp.pop %v666
    %v668 = vmul.f32 1.0, %v667
    %v669 = vmul.f32 %v661, %v494
    %v670 = vmul.f32 %v655, %v662
    %v671 = vadd.f32 %v669, %v670
    %v672 = vtanh.pop %v671
    %v673 = vmul.f32 %v668, %v672
    %s674 = scalar_lea.vmem [#allocation12], 16
    %675 = vst [vmem:[%s674] sm:$0xff] %v673
    %s676 = scalar_lea.vmem [#allocation4], 96
    %v677 = vld [vmem:[%s676] sm:$0xff]
    %v678 = vld [vmem:[%s676 + $0x8] sm:$0xff]
    %v679 = vld [vmem:[%s676 + $0x10] sm:$0xff]
    %v680 = vld [vmem:[%s676 + $0x18] sm:$0xff]
    %681 = vmatprep.subr.mxu0 %v142
    %682 = vmatpush1.msra.mxu0 %v141
    %683 = vmatprep.subr.mxu0 %v138
    %684 = vmatpush1.msra.mxu0 %v137
    %685 = vmatprep.subr.mxu0 %v134
    %686 = vmatpush1.msra.mxu0 %v133
    %687 = vmatprep.subr.mxu0 %v130
    %688 = vmatpush1.msra.mxu0 %v129
    %689 = vmatprep.subr.mxu0 %v126
    %690 = vmatpush1.msra.mxu0 %v125
    %691 = vmatprep.subr.mxu0 %v122
    %692 = vmatpush1.msra.mxu0 %v121
    %693 = vmatprep.subr.mxu0 %v118
    %694 = vmatpush1.msra.mxu0 %v117
    %695 = vmatprep.subr.mxu0 %v114
    %696 = vmatpush1.msra.mxu0 %v113
    %697 = vmatprep.subr.mxu0 %v110
    %698 = vmatpush1.msra.mxu0 %v109
    %699 = vmatprep.subr.mxu0 %v106
    %700 = vmatpush1.msra.mxu0 %v105
    %701 = vmatprep.subr.mxu0 %v102
    %702 = vmatpush1.msra.mxu0 %v101
    %703 = vmatprep.subr.mxu0 %v98
    %704 = vmatpush1.msra.mxu0 %v97
    %705 = vmatprep.subr.mxu0 %v94
    %706 = vmatpush1.msra.mxu0 %v93
    %707 = vmatprep.subr.mxu0 %v90
    %708 = vmatpush1.msra.mxu0 %v89
    %709 = vmatprep.subr.mxu0 %v86
    %710 = vmatpush1.msra.mxu0 %v85
    %711 = vmatprep.subr.mxu0 %v82
    %712 = vmatpush1.msra.mxu0 %v81
    %713 = vmatprep.subr.mxu0 0.0
    %714 = vmatpush2.msra.mxu0 0.0
    %715 = vmatprep.subr.mxu0 0.0
    %716 = vmatpush2.msra.mxu0 0.0
    %717 = vmatprep.subr.mxu0 0.0
    %718 = vmatpush2.msra.mxu0 0.0
    %719 = vmatprep.subr.mxu0 0.0
    %720 = vmatpush2.msra.mxu0 0.0
    %721 = vmatprep.subr.mxu0 0.0
    %722 = vmatpush2.msra.mxu0 0.0
    %723 = vmatprep.subr.mxu0 0.0
    %724 = vmatpush2.msra.mxu0 0.0
    %725 = vmatprep.subr.mxu0 0.0
    %726 = vmatpush2.msra.mxu0 0.0
    %727 = vmatprep.subr.mxu0 0.0
    %728 = vmatpush2.msra.mxu0 0.0
    %729 = vmatprep.subr.mxu0 0.0
    %730 = vmatpush2.msra.mxu0 0.0
    %731 = vmatprep.subr.mxu0 0.0
    %732 = vmatpush2.msra.mxu0 0.0
    %733 = vmatprep.subr.mxu0 0.0
    %734 = vmatpush2.msra.mxu0 0.0
    %735 = vmatprep.subr.mxu0 0.0
    %736 = vmatpush2.msra.mxu0 0.0
    %737 = vmatprep.subr.mxu0 0.0
    %738 = vmatpush2.msra.mxu0 0.0
    %739 = vmatprep.subr.mxu0 0.0
    %740 = vmatpush2.msra.mxu0 0.0
    %741 = vmatprep.subr.mxu0 0.0
    %742 = vmatpush2.msra.mxu0 0.0
    %743 = vmatprep.subr.mxu0 0.0
    %744 = vmatpush2.msra.mxu0 0.0
    %745 = vmatprep.mubr.f32.mxu0 0.0
    %746 = vmatmul.mubr.f32.gmra.mxu0 %v673
    %v747 = vpop.f32.mrf.mxu0
    %v748 = vadd.f32 0.0, %v747
    %v749 = vpop.f32.mrf.mxu0
    %v750 = vadd.f32 0.0, %v749
    %751 = vdwg.mxu0
    %752 = vmatprep.subr.mxu0 %v144
    %753 = vmatpush1.msra.mxu0 %v143
    %754 = vmatprep.subr.mxu0 %v140
    %755 = vmatpush1.msra.mxu0 %v139
    %756 = vmatprep.subr.mxu0 %v136
    %757 = vmatpush1.msra.mxu0 %v135
    %758 = vmatprep.subr.mxu0 %v132
    %759 = vmatpush1.msra.mxu0 %v131
    %760 = vmatprep.subr.mxu0 %v128
    %761 = vmatpush1.msra.mxu0 %v127
    %762 = vmatprep.subr.mxu0 %v124
    %763 = vmatpush1.msra.mxu0 %v123
    %764 = vmatprep.subr.mxu0 %v120
    %765 = vmatpush1.msra.mxu0 %v119
    %766 = vmatprep.subr.mxu0 %v116
    %767 = vmatpush1.msra.mxu0 %v115
    %768 = vmatprep.subr.mxu0 %v112
    %769 = vmatpush1.msra.mxu0 %v111
    %770 = vmatprep.subr.mxu0 %v108
    %771 = vmatpush1.msra.mxu0 %v107
    %772 = vmatprep.subr.mxu0 %v104
    %773 = vmatpush1.msra.mxu0 %v103
    %774 = vmatprep.subr.mxu0 %v100
    %775 = vmatpush1.msra.mxu0 %v99
    %776 = vmatprep.subr.mxu0 %v96
    %777 = vmatpush1.msra.mxu0 %v95
    %778 = vmatprep.subr.mxu0 %v92
    %779 = vmatpush1.msra.mxu0 %v91
    %780 = vmatprep.subr.mxu0 %v88
    %781 = vmatpush1.msra.mxu0 %v87
    %782 = vmatprep.subr.mxu0 %v84
    %783 = vmatpush1.msra.mxu0 %v83
    %784 = vmatprep.subr.mxu0 0.0
    %785 = vmatpush2.msra.mxu0 0.0
    %786 = vmatprep.subr.mxu0 0.0
    %787 = vmatpush2.msra.mxu0 0.0
    %788 = vmatprep.subr.mxu0 0.0
    %789 = vmatpush2.msra.mxu0 0.0
    %790 = vmatprep.subr.mxu0 0.0
    %791 = vmatpush2.msra.mxu0 0.0
    %792 = vmatprep.subr.mxu0 0.0
    %793 = vmatpush2.msra.mxu0 0.0
    %794 = vmatprep.subr.mxu0 0.0
    %795 = vmatpush2.msra.mxu0 0.0
    %796 = vmatprep.subr.mxu0 0.0
    %797 = vmatpush2.msra.mxu0 0.0
    %798 = vmatprep.subr.mxu0 0.0
    %799 = vmatpush2.msra.mxu0 0.0
    %800 = vmatprep.subr.mxu0 0.0
    %801 = vmatpush2.msra.mxu0 0.0
    %802 = vmatprep.subr.mxu0 0.0
    %803 = vmatpush2.msra.mxu0 0.0
    %804 = vmatprep.subr.mxu0 0.0
    %805 = vmatpush2.msra.mxu0 0.0
    %806 = vmatprep.subr.mxu0 0.0
    %807 = vmatpush2.msra.mxu0 0.0
    %808 = vmatprep.subr.mxu0 0.0
    %809 = vmatpush2.msra.mxu0 0.0
    %810 = vmatprep.subr.mxu0 0.0
    %811 = vmatpush2.msra.mxu0 0.0
    %812 = vmatprep.subr.mxu0 0.0
    %813 = vmatpush2.msra.mxu0 0.0
    %814 = vmatprep.subr.mxu0 0.0
    %815 = vmatpush2.msra.mxu0 0.0
    %816 = vmatprep.mubr.f32.mxu0 0.0
    %817 = vmatmul.mubr.f32.gmra.mxu0 %v673
    %v818 = vpop.f32.mrf.mxu0
    %v819 = vadd.f32 0.0, %v818
    %v820 = vpop.f32.mrf.mxu0
    %v821 = vadd.f32 0.0, %v820
    %822 = vdwg.mxu0
    %v823 = vadd.f32 %v677, %v748
    %v824 = vadd.f32 %v678, %v750
    %v825 = vadd.f32 %v679, %v819
    %v826 = vadd.f32 %v680, %v821
    %v827 = vxor.u32 %v823, 2147483648
    %v828 = vmul.f32 %v827, 1.442695
    %v829 = vpow.pop %v828
    %v830 = vadd.f32 %v829, 1.0
    %v831 = vrcp.pop %v830
    %v832 = vmul.f32 1.0, %v831
    %v833 = vxor.u32 %v824, 2147483648
    %v834 = vmul.f32 %v833, 1.442695
    %v835 = vpow.pop %v834
    %v836 = vadd.f32 %v835, 1.0
    %v837 = vrcp.pop %v836
    %v838 = vmul.f32 1.0, %v837
    %v839 = vtanh.pop %v825
    %v840 = vxor.u32 %v826, 2147483648
    %v841 = vmul.f32 %v840, 1.442695
    %v842 = vpow.pop %v841
    %v843 = vadd.f32 %v842, 1.0
    %v844 = vrcp.pop %v843
    %v845 = vmul.f32 1.0, %v844
    %v846 = vmul.f32 %v838, %v671
    %v847 = vmul.f32 %v832, %v839
    %v848 = vadd.f32 %v846, %v847
    %v849 = vtanh.pop %v848
    %v850 = vmul.f32 %v845, %v849
    %s851 = scalar_lea.vmem [#allocation12], 24
    %852 = vst [vmem:[%s851] sm:$0xff] %v850
    %s853 = scalar_lea.vmem [#allocation4], 128
    %v854 = vld [vmem:[%s853] sm:$0xff]
    %v855 = vld [vmem:[%s853 + $0x8] sm:$0xff]
    %v856 = vld [vmem:[%s853 + $0x10] sm:$0xff]
    %v857 = vld [vmem:[%s853 + $0x18] sm:$0xff]
    %858 = vmatprep.subr.mxu0 %v142
    %859 = vmatpush1.msra.mxu0 %v141
    %860 = vmatprep.subr.mxu0 %v138
    %861 = vmatpush1.msra.mxu0 %v137
    %862 = vmatprep.subr.mxu0 %v134
    %863 = vmatpush1.msra.mxu0 %v133
    %864 = vmatprep.subr.mxu0 %v130
    %865 = vmatpush1.msra.mxu0 %v129
    %866 = vmatprep.subr.mxu0 %v126
    %867 = vmatpush1.msra.mxu0 %v125
    %868 = vmatprep.subr.mxu0 %v122
    %869 = vmatpush1.msra.mxu0 %v121
    %870 = vmatprep.subr.mxu0 %v118
    %871 = vmatpush1.msra.mxu0 %v117
    %872 = vmatprep.subr.mxu0 %v114
    %873 = vmatpush1.msra.mxu0 %v113
    %874 = vmatprep.subr.mxu0 %v110
    %875 = vmatpush1.msra.mxu0 %v109
    %876 = vmatprep.subr.mxu0 %v106
    %877 = vmatpush1.msra.mxu0 %v105
    %878 = vmatprep.subr.mxu0 %v102
    %879 = vmatpush1.msra.mxu0 %v101
    %880 = vmatprep.subr.mxu0 %v98
    %881 = vmatpush1.msra.mxu0 %v97
    %882 = vmatprep.subr.mxu0 %v94
    %883 = vmatpush1.msra.mxu0 %v93
    %884 = vmatprep.subr.mxu0 %v90
    %885 = vmatpush1.msra.mxu0 %v89
    %886 = vmatprep.subr.mxu0 %v86
    %887 = vmatpush1.msra.mxu0 %v85
    %888 = vmatprep.subr.mxu0 %v82
    %889 = vmatpush1.msra.mxu0 %v81
    %890 = vmatprep.subr.mxu0 0.0
    %891 = vmatpush2.msra.mxu0 0.0
    %892 = vmatprep.subr.mxu0 0.0
    %893 = vmatpush2.msra.mxu0 0.0
    %894 = vmatprep.subr.mxu0 0.0
    %895 = vmatpush2.msra.mxu0 0.0
    %896 = vmatprep.subr.mxu0 0.0
    %897 = vmatpush2.msra.mxu0 0.0
    %898 = vmatprep.subr.mxu0 0.0
    %899 = vmatpush2.msra.mxu0 0.0
    %900 = vmatprep.subr.mxu0 0.0
    %901 = vmatpush2.msra.mxu0 0.0
    %902 = vmatprep.subr.mxu0 0.0
    %903 = vmatpush2.msra.mxu0 0.0
    %904 = vmatprep.subr.mxu0 0.0
    %905 = vmatpush2.msra.mxu0 0.0
    %906 = vmatprep.subr.mxu0 0.0
    %907 = vmatpush2.msra.mxu0 0.0
    %908 = vmatprep.subr.mxu0 0.0
    %909 = vmatpush2.msra.mxu0 0.0
    %910 = vmatprep.subr.mxu0 0.0
    %911 = vmatpush2.msra.mxu0 0.0
    %912 = vmatprep.subr.mxu0 0.0
    %913 = vmatpush2.msra.mxu0 0.0
    %914 = vmatprep.subr.mxu0 0.0
    %915 = vmatpush2.msra.mxu0 0.0
    %916 = vmatprep.subr.mxu0 0.0
    %917 = vmatpush2.msra.mxu0 0.0
    %918 = vmatprep.subr.mxu0 0.0
    %919 = vmatpush2.msra.mxu0 0.0
    %920 = vmatprep.subr.mxu0 0.0
    %921 = vmatpush2.msra.mxu0 0.0
    %922 = vmatprep.mubr.f32.mxu0 0.0
    %923 = vmatmul.mubr.f32.gmra.mxu0 %v850
    %v924 = vpop.f32.mrf.mxu0
    %v925 = vadd.f32 0.0, %v924
    %v926 = vpop.f32.mrf.mxu0
    %v927 = vadd.f32 0.0, %v926
    %928 = vdwg.mxu0
    %929 = vmatprep.subr.mxu0 %v144
    %930 = vmatpush1.msra.mxu0 %v143
    %931 = vmatprep.subr.mxu0 %v140
    %932 = vmatpush1.msra.mxu0 %v139
    %933 = vmatprep.subr.mxu0 %v136
    %934 = vmatpush1.msra.mxu0 %v135
    %935 = vmatprep.subr.mxu0 %v132
    %936 = vmatpush1.msra.mxu0 %v131
    %937 = vmatprep.subr.mxu0 %v128
    %938 = vmatpush1.msra.mxu0 %v127
    %939 = vmatprep.subr.mxu0 %v124
    %940 = vmatpush1.msra.mxu0 %v123
    %941 = vmatprep.subr.mxu0 %v120
    %942 = vmatpush1.msra.mxu0 %v119
    %943 = vmatprep.subr.mxu0 %v116
    %944 = vmatpush1.msra.mxu0 %v115
    %945 = vmatprep.subr.mxu0 %v112
    %946 = vmatpush1.msra.mxu0 %v111
    %947 = vmatprep.subr.mxu0 %v108
    %948 = vmatpush1.msra.mxu0 %v107
    %949 = vmatprep.subr.mxu0 %v104
    %950 = vmatpush1.msra.mxu0 %v103
    %951 = vmatprep.subr.mxu0 %v100
    %952 = vmatpush1.msra.mxu0 %v99
    %953 = vmatprep.subr.mxu0 %v96
    %954 = vmatpush1.msra.mxu0 %v95
    %955 = vmatprep.subr.mxu0 %v92
    %956 = vmatpush1.msra.mxu0 %v91
    %957 = vmatprep.subr.mxu0 %v88
    %958 = vmatpush1.msra.mxu0 %v87
    %959 = vmatprep.subr.mxu0 %v84
    %960 = vmatpush1.msra.mxu0 %v83
    %961 = vmatprep.subr.mxu0 0.0
    %962 = vmatpush2.msra.mxu0 0.0
    %963 = vmatprep.subr.mxu0 0.0
    %964 = vmatpush2.msra.mxu0 0.0
    %965 = vmatprep.subr.mxu0 0.0
    %966 = vmatpush2.msra.mxu0 0.0
    %967 = vmatprep.subr.mxu0 0.0
    %968 = vmatpush2.msra.mxu0 0.0
    %969 = vmatprep.subr.mxu0 0.0
    %970 = vmatpush2.msra.mxu0 0.0
    %971 = vmatprep.subr.mxu0 0.0
    %972 = vmatpush2.msra.mxu0 0.0
    %973 = vmatprep.subr.mxu0 0.0
    %974 = vmatpush2.msra.mxu0 0.0
    %975 = vmatprep.subr.mxu0 0.0
    %976 = vmatpush2.msra.mxu0 0.0
    %977 = vmatprep.subr.mxu0 0.0
    %978 = vmatpush2.msra.mxu0 0.0
    %979 = vmatprep.subr.mxu0 0.0
    %980 = vmatpush2.msra.mxu0 0.0
    %981 = vmatprep.subr.mxu0 0.0
    %982 = vmatpush2.msra.mxu0 0.0
    %983 = vmatprep.subr.mxu0 0.0
    %984 = vmatpush2.msra.mxu0 0.0
    %985 = vmatprep.subr.mxu0 0.0
    %986 = vmatpush2.msra.mxu0 0.0
    %987 = vmatprep.subr.mxu0 0.0
    %988 = vmatpush2.msra.mxu0 0.0
    %989 = vmatprep.subr.mxu0 0.0
    %990 = vmatpush2.msra.mxu0 0.0
    %991 = vmatprep.subr.mxu0 0.0
    %992 = vmatpush2.msra.mxu0 0.0
    %993 = vmatprep.mubr.f32.mxu0 0.0
    %994 = vmatmul.mubr.f32.gmra.mxu0 %v850
    %v995 = vpop.f32.mrf.mxu0
    %v996 = vadd.f32 0.0, %v995
    %v997 = vpop.f32.mrf.mxu0
    %v998 = vadd.f32 0.0, %v997
    %999 = vdwg.mxu0
    %v1000 = vadd.f32 %v854, %v925
    %v1001 = vadd.f32 %v855, %v927
    %v1002 = vadd.f32 %v856, %v996
    %v1003 = vadd.f32 %v857, %v998
    %v1004 = vxor.u32 %v1000, 2147483648
    %v1005 = vmul.f32 %v1004, 1.442695
    %v1006 = vpow.pop %v1005
    %v1007 = vadd.f32 %v1006, 1.0
    %v1008 = vrcp.pop %v1007
    %v1009 = vmul.f32 1.0, %v1008
    %v1010 = vxor.u32 %v1001, 2147483648
    %v1011 = vmul.f32 %v1010, 1.442695
    %v1012 = vpow.pop %v1011
    %v1013 = vadd.f32 %v1012, 1.0
    %v1014 = vrcp.pop %v1013
    %v1015 = vmul.f32 1.0, %v1014
    %v1016 = vtanh.pop %v1002
    %v1017 = vxor.u32 %v1003, 2147483648
    %v1018 = vmul.f32 %v1017, 1.442695
    %v1019 = vpow.pop %v1018
    %v1020 = vadd.f32 %v1019, 1.0
    %v1021 = vrcp.pop %v1020
    %v1022 = vmul.f32 1.0, %v1021
    %v1023 = vmul.f32 %v1015, %v848
    %v1024 = vmul.f32 %v1009, %v1016
    %v1025 = vadd.f32 %v1023, %v1024
    %v1026 = vtanh.pop %v1025
    %v1027 = vmul.f32 %v1022, %v1026
    %s1028 = scalar_lea.vmem [#allocation12], 32
    %1029 = vst [vmem:[%s1028] sm:$0xff] %v1027
    %s1030 = scalar_lea.vmem [#allocation4], 160
    %v1031 = vld [vmem:[%s1030] sm:$0xff]
    %v1032 = vld [vmem:[%s1030 + $0x8] sm:$0xff]
    %v1033 = vld [vmem:[%s1030 + $0x10] sm:$0xff]
    %v1034 = vld [vmem:[%s1030 + $0x18] sm:$0xff]
    %1035 = vmatprep.subr.mxu0 %v142
    %1036 = vmatpush1.msra.mxu0 %v141
    %1037 = vmatprep.subr.mxu0 %v138
    %1038 = vmatpush1.msra.mxu0 %v137
    %1039 = vmatprep.subr.mxu0 %v134
    %1040 = vmatpush1.msra.mxu0 %v133
    %1041 = vmatprep.subr.mxu0 %v130
    %1042 = vmatpush1.msra.mxu0 %v129
    %1043 = vmatprep.subr.mxu0 %v126
    %1044 = vmatpush1.msra.mxu0 %v125
    %1045 = vmatprep.subr.mxu0 %v122
    %1046 = vmatpush1.msra.mxu0 %v121
    %1047 = vmatprep.subr.mxu0 %v118
    %1048 = vmatpush1.msra.mxu0 %v117
    %1049 = vmatprep.subr.mxu0 %v114
    %1050 = vmatpush1.msra.mxu0 %v113
    %1051 = vmatprep.subr.mxu0 %v110
    %1052 = vmatpush1.msra.mxu0 %v109
    %1053 = vmatprep.subr.mxu0 %v106
    %1054 = vmatpush1.msra.mxu0 %v105
    %1055 = vmatprep.subr.mxu0 %v102
    %1056 = vmatpush1.msra.mxu0 %v101
    %1057 = vmatprep.subr.mxu0 %v98
    %1058 = vmatpush1.msra.mxu0 %v97
    %1059 = vmatprep.subr.mxu0 %v94
    %1060 = vmatpush1.msra.mxu0 %v93
    %1061 = vmatprep.subr.mxu0 %v90
    %1062 = vmatpush1.msra.mxu0 %v89
    %1063 = vmatprep.subr.mxu0 %v86
    %1064 = vmatpush1.msra.mxu0 %v85
    %1065 = vmatprep.subr.mxu0 %v82
    %1066 = vmatpush1.msra.mxu0 %v81
    %1067 = vmatprep.subr.mxu0 0.0
    %1068 = vmatpush2.msra.mxu0 0.0
    %1069 = vmatprep.subr.mxu0 0.0
    %1070 = vmatpush2.msra.mxu0 0.0
    %1071 = vmatprep.subr.mxu0 0.0
    %1072 = vmatpush2.msra.mxu0 0.0
    %1073 = vmatprep.subr.mxu0 0.0
    %1074 = vmatpush2.msra.mxu0 0.0
    %1075 = vmatprep.subr.mxu0 0.0
    %1076 = vmatpush2.msra.mxu0 0.0
    %1077 = vmatprep.subr.mxu0 0.0
    %1078 = vmatpush2.msra.mxu0 0.0
    %1079 = vmatprep.subr.mxu0 0.0
    %1080 = vmatpush2.msra.mxu0 0.0
    %1081 = vmatprep.subr.mxu0 0.0
    %1082 = vmatpush2.msra.mxu0 0.0
    %1083 = vmatprep.subr.mxu0 0.0
    %1084 = vmatpush2.msra.mxu0 0.0
    %1085 = vmatprep.subr.mxu0 0.0
    %1086 = vmatpush2.msra.mxu0 0.0
    %1087 = vmatprep.subr.mxu0 0.0
    %1088 = vmatpush2.msra.mxu0 0.0
    %1089 = vmatprep.subr.mxu0 0.0
    %1090 = vmatpush2.msra.mxu0 0.0
    %1091 = vmatprep.subr.mxu0 0.0
    %1092 = vmatpush2.msra.mxu0 0.0
    %1093 = vmatprep.subr.mxu0 0.0
    %1094 = vmatpush2.msra.mxu0 0.0
    %1095 = vmatprep.subr.mxu0 0.0
    %1096 = vmatpush2.msra.mxu0 0.0
    %1097 = vmatprep.subr.mxu0 0.0
    %1098 = vmatpush2.msra.mxu0 0.0
    %1099 = vmatprep.mubr.f32.mxu0 0.0
    %1100 = vmatmul.mubr.f32.gmra.mxu0 %v1027
    %v1101 = vpop.f32.mrf.mxu0
    %v1102 = vadd.f32 0.0, %v1101
    %v1103 = vpop.f32.mrf.mxu0
    %v1104 = vadd.f32 0.0, %v1103
    %1105 = vdwg.mxu0
    %1106 = vmatprep.subr.mxu0 %v144
    %1107 = vmatpush1.msra.mxu0 %v143
    %1108 = vmatprep.subr.mxu0 %v140
    %1109 = vmatpush1.msra.mxu0 %v139
    %1110 = vmatprep.subr.mxu0 %v136
    %1111 = vmatpush1.msra.mxu0 %v135
    %1112 = vmatprep.subr.mxu0 %v132
    %1113 = vmatpush1.msra.mxu0 %v131
    %1114 = vmatprep.subr.mxu0 %v128
    %1115 = vmatpush1.msra.mxu0 %v127
    %1116 = vmatprep.subr.mxu0 %v124
    %1117 = vmatpush1.msra.mxu0 %v123
    %1118 = vmatprep.subr.mxu0 %v120
    %1119 = vmatpush1.msra.mxu0 %v119
    %1120 = vmatprep.subr.mxu0 %v116
    %1121 = vmatpush1.msra.mxu0 %v115
    %1122 = vmatprep.subr.mxu0 %v112
    %1123 = vmatpush1.msra.mxu0 %v111
    %1124 = vmatprep.subr.mxu0 %v108
    %1125 = vmatpush1.msra.mxu0 %v107
    %1126 = vmatprep.subr.mxu0 %v104
    %1127 = vmatpush1.msra.mxu0 %v103
    %1128 = vmatprep.subr.mxu0 %v100
    %1129 = vmatpush1.msra.mxu0 %v99
    %1130 = vmatprep.subr.mxu0 %v96
    %1131 = vmatpush1.msra.mxu0 %v95
    %1132 = vmatprep.subr.mxu0 %v92
    %1133 = vmatpush1.msra.mxu0 %v91
    %1134 = vmatprep.subr.mxu0 %v88
    %1135 = vmatpush1.msra.mxu0 %v87
    %1136 = vmatprep.subr.mxu0 %v84
    %1137 = vmatpush1.msra.mxu0 %v83
    %1138 = vmatprep.subr.mxu0 0.0
    %1139 = vmatpush2.msra.mxu0 0.0
    %1140 = vmatprep.subr.mxu0 0.0
    %1141 = vmatpush2.msra.mxu0 0.0
    %1142 = vmatprep.subr.mxu0 0.0
    %1143 = vmatpush2.msra.mxu0 0.0
    %1144 = vmatprep.subr.mxu0 0.0
    %1145 = vmatpush2.msra.mxu0 0.0
    %1146 = vmatprep.subr.mxu0 0.0
    %1147 = vmatpush2.msra.mxu0 0.0
    %1148 = vmatprep.subr.mxu0 0.0
    %1149 = vmatpush2.msra.mxu0 0.0
    %1150 = vmatprep.subr.mxu0 0.0
    %1151 = vmatpush2.msra.mxu0 0.0
    %1152 = vmatprep.subr.mxu0 0.0
    %1153 = vmatpush2.msra.mxu0 0.0
    %1154 = vmatprep.subr.mxu0 0.0
    %1155 = vmatpush2.msra.mxu0 0.0
    %1156 = vmatprep.subr.mxu0 0.0
    %1157 = vmatpush2.msra.mxu0 0.0
    %1158 = vmatprep.subr.mxu0 0.0
    %1159 = vmatpush2.msra.mxu0 0.0
    %1160 = vmatprep.subr.mxu0 0.0
    %1161 = vmatpush2.msra.mxu0 0.0
    %1162 = vmatprep.subr.mxu0 0.0
    %1163 = vmatpush2.msra.mxu0 0.0
    %1164 = vmatprep.subr.mxu0 0.0
    %1165 = vmatpush2.msra.mxu0 0.0
    %1166 = vmatprep.subr.mxu0 0.0
    %1167 = vmatpush2.msra.mxu0 0.0
    %1168 = vmatprep.subr.mxu0 0.0
    %1169 = vmatpush2.msra.mxu0 0.0
    %1170 = vmatprep.mubr.f32.mxu0 0.0
    %1171 = vmatmul.mubr.f32.gmra.mxu0 %v1027
    %v1172 = vpop.f32.mrf.mxu0
    %v1173 = vadd.f32 0.0, %v1172
    %v1174 = vpop.f32.mrf.mxu0
    %v1175 = vadd.f32 0.0, %v1174
    %1176 = vdwg.mxu0
    %v1177 = vadd.f32 %v1031, %v1102
    %v1178 = vadd.f32 %v1032, %v1104
    %v1179 = vadd.f32 %v1033, %v1173
    %v1180 = vadd.f32 %v1034, %v1175
    %v1181 = vxor.u32 %v1177, 2147483648
    %v1182 = vmul.f32 %v1181, 1.442695
    %v1183 = vpow.pop %v1182
    %v1184 = vadd.f32 %v1183, 1.0
    %v1185 = vrcp.pop %v1184
    %v1186 = vmul.f32 1.0, %v1185
    %v1187 = vxor.u32 %v1178, 2147483648
    %v1188 = vmul.f32 %v1187, 1.442695
    %v1189 = vpow.pop %v1188
    %v1190 = vadd.f32 %v1189, 1.0
    %v1191 = vrcp.pop %v1190
    %v1192 = vmul.f32 1.0, %v1191
    %v1193 = vtanh.pop %v1179
    %v1194 = vxor.u32 %v1180, 2147483648
    %v1195 = vmul.f32 %v1194, 1.442695
    %v1196 = vpow.pop %v1195
    %v1197 = vadd.f32 %v1196, 1.0
    %v1198 = vrcp.pop %v1197
    %v1199 = vmul.f32 1.0, %v1198
    %v1200 = vmul.f32 %v1192, %v1025
    %v1201 = vmul.f32 %v1186, %v1193
    %v1202 = vadd.f32 %v1200, %v1201
    %v1203 = vtanh.pop %v1202
    %v1204 = vmul.f32 %v1199, %v1203
    %s1205 = scalar_lea.vmem [#allocation12], 40
    %1206 = vst [vmem:[%s1205] sm:$0xff] %v1204
    %s1207 = scalar_lea.vmem [#allocation4], 192
    %v1208 = vld [vmem:[%s1207] sm:$0xff]
    %v1209 = vld [vmem:[%s1207 + $0x8] sm:$0xff]
    %v1210 = vld [vmem:[%s1207 + $0x10] sm:$0xff]
    %v1211 = vld [vmem:[%s1207 + $0x18] sm:$0xff]
    %1212 = vmatprep.subr.mxu0 %v142
    %1213 = vmatpush1.msra.mxu0 %v141
    %1214 = vmatprep.subr.mxu0 %v138
    %1215 = vmatpush1.msra.mxu0 %v137
    %1216 = vmatprep.subr.mxu0 %v134
    %1217 = vmatpush1.msra.mxu0 %v133
    %1218 = vmatprep.subr.mxu0 %v130
    %1219 = vmatpush1.msra.mxu0 %v129
    %1220 = vmatprep.subr.mxu0 %v126
    %1221 = vmatpush1.msra.mxu0 %v125
    %1222 = vmatprep.subr.mxu0 %v122
    %1223 = vmatpush1.msra.mxu0 %v121
    %1224 = vmatprep.subr.mxu0 %v118
    %1225 = vmatpush1.msra.mxu0 %v117
    %1226 = vmatprep.subr.mxu0 %v114
    %1227 = vmatpush1.msra.mxu0 %v113
    %1228 = vmatprep.subr.mxu0 %v110
    %1229 = vmatpush1.msra.mxu0 %v109
    %1230 = vmatprep.subr.mxu0 %v106
    %1231 = vmatpush1.msra.mxu0 %v105
    %1232 = vmatprep.subr.mxu0 %v102
    %1233 = vmatpush1.msra.mxu0 %v101
    %1234 = vmatprep.subr.mxu0 %v98
    %1235 = vmatpush1.msra.mxu0 %v97
    %1236 = vmatprep.subr.mxu0 %v94
    %1237 = vmatpush1.msra.mxu0 %v93
    %1238 = vmatprep.subr.mxu0 %v90
    %1239 = vmatpush1.msra.mxu0 %v89
    %1240 = vmatprep.subr.mxu0 %v86
    %1241 = vmatpush1.msra.mxu0 %v85
    %1242 = vmatprep.subr.mxu0 %v82
    %1243 = vmatpush1.msra.mxu0 %v81
    %1244 = vmatprep.subr.mxu0 0.0
    %1245 = vmatpush2.msra.mxu0 0.0
    %1246 = vmatprep.subr.mxu0 0.0
    %1247 = vmatpush2.msra.mxu0 0.0
    %1248 = vmatprep.subr.mxu0 0.0
    %1249 = vmatpush2.msra.mxu0 0.0
    %1250 = vmatprep.subr.mxu0 0.0
    %1251 = vmatpush2.msra.mxu0 0.0
    %1252 = vmatprep.subr.mxu0 0.0
    %1253 = vmatpush2.msra.mxu0 0.0
    %1254 = vmatprep.subr.mxu0 0.0
    %1255 = vmatpush2.msra.mxu0 0.0
    %1256 = vmatprep.subr.mxu0 0.0
    %1257 = vmatpush2.msra.mxu0 0.0
    %1258 = vmatprep.subr.mxu0 0.0
    %1259 = vmatpush2.msra.mxu0 0.0
    %1260 = vmatprep.subr.mxu0 0.0
    %1261 = vmatpush2.msra.mxu0 0.0
    %1262 = vmatprep.subr.mxu0 0.0
    %1263 = vmatpush2.msra.mxu0 0.0
    %1264 = vmatprep.subr.mxu0 0.0
    %1265 = vmatpush2.msra.mxu0 0.0
    %1266 = vmatprep.subr.mxu0 0.0
    %1267 = vmatpush2.msra.mxu0 0.0
    %1268 = vmatprep.subr.mxu0 0.0
    %1269 = vmatpush2.msra.mxu0 0.0
    %1270 = vmatprep.subr.mxu0 0.0
    %1271 = vmatpush2.msra.mxu0 0.0
    %1272 = vmatprep.subr.mxu0 0.0
    %1273 = vmatpush2.msra.mxu0 0.0
    %1274 = vmatprep.subr.mxu0 0.0
    %1275 = vmatpush2.msra.mxu0 0.0
    %1276 = vmatprep.mubr.f32.mxu0 0.0
    %1277 = vmatmul.mubr.f32.gmra.mxu0 %v1204
    %v1278 = vpop.f32.mrf.mxu0
    %v1279 = vadd.f32 0.0, %v1278
    %v1280 = vpop.f32.mrf.mxu0
    %v1281 = vadd.f32 0.0, %v1280
    %1282 = vdwg.mxu0
    %1283 = vmatprep.subr.mxu0 %v144
    %1284 = vmatpush1.msra.mxu0 %v143
    %1285 = vmatprep.subr.mxu0 %v140
    %1286 = vmatpush1.msra.mxu0 %v139
    %1287 = vmatprep.subr.mxu0 %v136
    %1288 = vmatpush1.msra.mxu0 %v135
    %1289 = vmatprep.subr.mxu0 %v132
    %1290 = vmatpush1.msra.mxu0 %v131
    %1291 = vmatprep.subr.mxu0 %v128
    %1292 = vmatpush1.msra.mxu0 %v127
    %1293 = vmatprep.subr.mxu0 %v124
    %1294 = vmatpush1.msra.mxu0 %v123
    %1295 = vmatprep.subr.mxu0 %v120
    %1296 = vmatpush1.msra.mxu0 %v119
    %1297 = vmatprep.subr.mxu0 %v116
    %1298 = vmatpush1.msra.mxu0 %v115
    %1299 = vmatprep.subr.mxu0 %v112
    %1300 = vmatpush1.msra.mxu0 %v111
    %1301 = vmatprep.subr.mxu0 %v108
    %1302 = vmatpush1.msra.mxu0 %v107
    %1303 = vmatprep.subr.mxu0 %v104
    %1304 = vmatpush1.msra.mxu0 %v103
    %1305 = vmatprep.subr.mxu0 %v100
    %1306 = vmatpush1.msra.mxu0 %v99
    %1307 = vmatprep.subr.mxu0 %v96
    %1308 = vmatpush1.msra.mxu0 %v95
    %1309 = vmatprep.subr.mxu0 %v92
    %1310 = vmatpush1.msra.mxu0 %v91
    %1311 = vmatprep.subr.mxu0 %v88
    %1312 = vmatpush1.msra.mxu0 %v87
    %1313 = vmatprep.subr.mxu0 %v84
    %1314 = vmatpush1.msra.mxu0 %v83
    %1315 = vmatprep.subr.mxu0 0.0
    %1316 = vmatpush2.msra.mxu0 0.0
    %1317 = vmatprep.subr.mxu0 0.0
    %1318 = vmatpush2.msra.mxu0 0.0
    %1319 = vmatprep.subr.mxu0 0.0
    %1320 = vmatpush2.msra.mxu0 0.0
    %1321 = vmatprep.subr.mxu0 0.0
    %1322 = vmatpush2.msra.mxu0 0.0
    %1323 = vmatprep.subr.mxu0 0.0
    %1324 = vmatpush2.msra.mxu0 0.0
    %1325 = vmatprep.subr.mxu0 0.0
    %1326 = vmatpush2.msra.mxu0 0.0
    %1327 = vmatprep.subr.mxu0 0.0
    %1328 = vmatpush2.msra.mxu0 0.0
    %1329 = vmatprep.subr.mxu0 0.0
    %1330 = vmatpush2.msra.mxu0 0.0
    %1331 = vmatprep.subr.mxu0 0.0
    %1332 = vmatpush2.msra.mxu0 0.0
    %1333 = vmatprep.subr.mxu0 0.0
    %1334 = vmatpush2.msra.mxu0 0.0
    %1335 = vmatprep.subr.mxu0 0.0
    %1336 = vmatpush2.msra.mxu0 0.0
    %1337 = vmatprep.subr.mxu0 0.0
    %1338 = vmatpush2.msra.mxu0 0.0
    %1339 = vmatprep.subr.mxu0 0.0
    %1340 = vmatpush2.msra.mxu0 0.0
    %1341 = vmatprep.subr.mxu0 0.0
    %1342 = vmatpush2.msra.mxu0 0.0
    %1343 = vmatprep.subr.mxu0 0.0
    %1344 = vmatpush2.msra.mxu0 0.0
    %1345 = vmatprep.subr.mxu0 0.0
    %1346 = vmatpush2.msra.mxu0 0.0
    %1347 = vmatprep.mubr.f32.mxu0 0.0
    %1348 = vmatmul.mubr.f32.gmra.mxu0 %v1204
    %v1349 = vpop.f32.mrf.mxu0
    %v1350 = vadd.f32 0.0, %v1349
    %v1351 = vpop.f32.mrf.mxu0
    %v1352 = vadd.f32 0.0, %v1351
    %1353 = vdwg.mxu0
    %v1354 = vadd.f32 %v1208, %v1279
    %v1355 = vadd.f32 %v1209, %v1281
    %v1356 = vadd.f32 %v1210, %v1350
    %v1357 = vadd.f32 %v1211, %v1352
    %v1358 = vxor.u32 %v1354, 2147483648
    %v1359 = vmul.f32 %v1358, 1.442695
    %v1360 = vpow.pop %v1359
    %v1361 = vadd.f32 %v1360, 1.0
    %v1362 = vrcp.pop %v1361
    %v1363 = vmul.f32 1.0, %v1362
    %v1364 = vxor.u32 %v1355, 2147483648
    %v1365 = vmul.f32 %v1364, 1.442695
    %v1366 = vpow.pop %v1365
    %v1367 = vadd.f32 %v1366, 1.0
    %v1368 = vrcp.pop %v1367
    %v1369 = vmul.f32 1.0, %v1368
    %v1370 = vtanh.pop %v1356
    %v1371 = vxor.u32 %v1357, 2147483648
    %v1372 = vmul.f32 %v1371, 1.442695
    %v1373 = vpow.pop %v1372
    %v1374 = vadd.f32 %v1373, 1.0
    %v1375 = vrcp.pop %v1374
    %v1376 = vmul.f32 1.0, %v1375
    %v1377 = vmul.f32 %v1369, %v1202
    %v1378 = vmul.f32 %v1363, %v1370
    %v1379 = vadd.f32 %v1377, %v1378
    %v1380 = vtanh.pop %v1379
    %v1381 = vmul.f32 %v1376, %v1380
    %s1382 = scalar_lea.vmem [#allocation12], 48
    %1383 = vst [vmem:[%s1382] sm:$0xff] %v1381
    %s1384 = scalar_lea.vmem [#allocation4], 224
    %v1385 = vld [vmem:[%s1384] sm:$0xff]
    %v1386 = vld [vmem:[%s1384 + $0x8] sm:$0xff]
    %v1387 = vld [vmem:[%s1384 + $0x10] sm:$0xff]
    %v1388 = vld [vmem:[%s1384 + $0x18] sm:$0xff]
    %1389 = vmatprep.subr.mxu0 %v142
    %1390 = vmatpush1.msra.mxu0 %v141
    %1391 = vmatprep.subr.mxu0 %v138
    %1392 = vmatpush1.msra.mxu0 %v137
    %1393 = vmatprep.subr.mxu0 %v134
    %1394 = vmatpush1.msra.mxu0 %v133
    %1395 = vmatprep.subr.mxu0 %v130
    %1396 = vmatpush1.msra.mxu0 %v129
    %1397 = vmatprep.subr.mxu0 %v126
    %1398 = vmatpush1.msra.mxu0 %v125
    %1399 = vmatprep.subr.mxu0 %v122
    %1400 = vmatpush1.msra.mxu0 %v121
    %1401 = vmatprep.subr.mxu0 %v118
    %1402 = vmatpush1.msra.mxu0 %v117
    %1403 = vmatprep.subr.mxu0 %v114
    %1404 = vmatpush1.msra.mxu0 %v113
    %1405 = vmatprep.subr.mxu0 %v110
    %1406 = vmatpush1.msra.mxu0 %v109
    %1407 = vmatprep.subr.mxu0 %v106
    %1408 = vmatpush1.msra.mxu0 %v105
    %1409 = vmatprep.subr.mxu0 %v102
    %1410 = vmatpush1.msra.mxu0 %v101
    %1411 = vmatprep.subr.mxu0 %v98
    %1412 = vmatpush1.msra.mxu0 %v97
    %1413 = vmatprep.subr.mxu0 %v94
    %1414 = vmatpush1.msra.mxu0 %v93
    %1415 = vmatprep.subr.mxu0 %v90
    %1416 = vmatpush1.msra.mxu0 %v89
    %1417 = vmatprep.subr.mxu0 %v86
    %1418 = vmatpush1.msra.mxu0 %v85
    %1419 = vmatprep.subr.mxu0 %v82
    %1420 = vmatpush1.msra.mxu0 %v81
    %1421 = vmatprep.subr.mxu0 0.0
    %1422 = vmatpush2.msra.mxu0 0.0
    %1423 = vmatprep.subr.mxu0 0.0
    %1424 = vmatpush2.msra.mxu0 0.0
    %1425 = vmatprep.subr.mxu0 0.0
    %1426 = vmatpush2.msra.mxu0 0.0
    %1427 = vmatprep.subr.mxu0 0.0
    %1428 = vmatpush2.msra.mxu0 0.0
    %1429 = vmatprep.subr.mxu0 0.0
    %1430 = vmatpush2.msra.mxu0 0.0
    %1431 = vmatprep.subr.mxu0 0.0
    %1432 = vmatpush2.msra.mxu0 0.0
    %1433 = vmatprep.subr.mxu0 0.0
    %1434 = vmatpush2.msra.mxu0 0.0
    %1435 = vmatprep.subr.mxu0 0.0
    %1436 = vmatpush2.msra.mxu0 0.0
    %1437 = vmatprep.subr.mxu0 0.0
    %1438 = vmatpush2.msra.mxu0 0.0
    %1439 = vmatprep.subr.mxu0 0.0
    %1440 = vmatpush2.msra.mxu0 0.0
    %1441 = vmatprep.subr.mxu0 0.0
    %1442 = vmatpush2.msra.mxu0 0.0
    %1443 = vmatprep.subr.mxu0 0.0
    %1444 = vmatpush2.msra.mxu0 0.0
    %1445 = vmatprep.subr.mxu0 0.0
    %1446 = vmatpush2.msra.mxu0 0.0
    %1447 = vmatprep.subr.mxu0 0.0
    %1448 = vmatpush2.msra.mxu0 0.0
    %1449 = vmatprep.subr.mxu0 0.0
    %1450 = vmatpush2.msra.mxu0 0.0
    %1451 = vmatprep.subr.mxu0 0.0
    %1452 = vmatpush2.msra.mxu0 0.0
    %1453 = vmatprep.mubr.f32.mxu0 0.0
    %1454 = vmatmul.mubr.f32.gmra.mxu0 %v1381
    %v1455 = vpop.f32.mrf.mxu0
    %v1456 = vadd.f32 0.0, %v1455
    %v1457 = vpop.f32.mrf.mxu0
    %v1458 = vadd.f32 0.0, %v1457
    %1459 = vdwg.mxu0
    %1460 = vmatprep.subr.mxu0 %v144
    %1461 = vmatpush1.msra.mxu0 %v143
    %1462 = vmatprep.subr.mxu0 %v140
    %1463 = vmatpush1.msra.mxu0 %v139
    %1464 = vmatprep.subr.mxu0 %v136
    %1465 = vmatpush1.msra.mxu0 %v135
    %1466 = vmatprep.subr.mxu0 %v132
    %1467 = vmatpush1.msra.mxu0 %v131
    %1468 = vmatprep.subr.mxu0 %v128
    %1469 = vmatpush1.msra.mxu0 %v127
    %1470 = vmatprep.subr.mxu0 %v124
    %1471 = vmatpush1.msra.mxu0 %v123
    %1472 = vmatprep.subr.mxu0 %v120
    %1473 = vmatpush1.msra.mxu0 %v119
    %1474 = vmatprep.subr.mxu0 %v116
    %1475 = vmatpush1.msra.mxu0 %v115
    %1476 = vmatprep.subr.mxu0 %v112
    %1477 = vmatpush1.msra.mxu0 %v111
    %1478 = vmatprep.subr.mxu0 %v108
    %1479 = vmatpush1.msra.mxu0 %v107
    %1480 = vmatprep.subr.mxu0 %v104
    %1481 = vmatpush1.msra.mxu0 %v103
    %1482 = vmatprep.subr.mxu0 %v100
    %1483 = vmatpush1.msra.mxu0 %v99
    %1484 = vmatprep.subr.mxu0 %v96
    %1485 = vmatpush1.msra.mxu0 %v95
    %1486 = vmatprep.subr.mxu0 %v92
    %1487 = vmatpush1.msra.mxu0 %v91
    %1488 = vmatprep.subr.mxu0 %v88
    %1489 = vmatpush1.msra.mxu0 %v87
    %1490 = vmatprep.subr.mxu0 %v84
    %1491 = vmatpush1.msra.mxu0 %v83
    %1492 = vmatprep.subr.mxu0 0.0
    %1493 = vmatpush2.msra.mxu0 0.0
    %1494 = vmatprep.subr.mxu0 0.0
    %1495 = vmatpush2.msra.mxu0 0.0
    %1496 = vmatprep.subr.mxu0 0.0
    %1497 = vmatpush2.msra.mxu0 0.0
    %1498 = vmatprep.subr.mxu0 0.0
    %1499 = vmatpush2.msra.mxu0 0.0
    %1500 = vmatprep.subr.mxu0 0.0
    %1501 = vmatpush2.msra.mxu0 0.0
    %1502 = vmatprep.subr.mxu0 0.0
    %1503 = vmatpush2.msra.mxu0 0.0
    %1504 = vmatprep.subr.mxu0 0.0
    %1505 = vmatpush2.msra.mxu0 0.0
    %1506 = vmatprep.subr.mxu0 0.0
    %1507 = vmatpush2.msra.mxu0 0.0
    %1508 = vmatprep.subr.mxu0 0.0
    %1509 = vmatpush2.msra.mxu0 0.0
    %1510 = vmatprep.subr.mxu0 0.0
    %1511 = vmatpush2.msra.mxu0 0.0
    %1512 = vmatprep.subr.mxu0 0.0
    %1513 = vmatpush2.msra.mxu0 0.0
    %1514 = vmatprep.subr.mxu0 0.0
    %1515 = vmatpush2.msra.mxu0 0.0
    %1516 = vmatprep.subr.mxu0 0.0
    %1517 = vmatpush2.msra.mxu0 0.0
    %1518 = vmatprep.subr.mxu0 0.0
    %1519 = vmatpush2.msra.mxu0 0.0
    %1520 = vmatprep.subr.mxu0 0.0
    %1521 = vmatpush2.msra.mxu0 0.0
    %1522 = vmatprep.subr.mxu0 0.0
    %1523 = vmatpush2.msra.mxu0 0.0
    %1524 = vmatprep.mubr.f32.mxu0 0.0
    %1525 = vmatmul.mubr.f32.gmra.mxu0 %v1381
    %v1526 = vpop.f32.mrf.mxu0
    %v1527 = vadd.f32 0.0, %v1526
    %v1528 = vpop.f32.mrf.mxu0
    %v1529 = vadd.f32 0.0, %v1528
    %1530 = vdwg.mxu0
    %v1531 = vadd.f32 %v1385, %v1456
    %v1532 = vadd.f32 %v1386, %v1458
    %v1533 = vadd.f32 %v1387, %v1527
    %v1534 = vadd.f32 %v1388, %v1529
    %v1535 = vxor.u32 %v1531, 2147483648
    %v1536 = vmul.f32 %v1535, 1.442695
    %v1537 = vpow.pop %v1536
    %v1538 = vadd.f32 %v1537, 1.0
    %v1539 = vrcp.pop %v1538
    %v1540 = vmul.f32 1.0, %v1539
    %v1541 = vxor.u32 %v1532, 2147483648
    %v1542 = vmul.f32 %v1541, 1.442695
    %v1543 = vpow.pop %v1542
    %v1544 = vadd.f32 %v1543, 1.0
    %v1545 = vrcp.pop %v1544
    %v1546 = vmul.f32 1.0, %v1545
    %v1547 = vtanh.pop %v1533
    %v1548 = vxor.u32 %v1534, 2147483648
    %v1549 = vmul.f32 %v1548, 1.442695
    %v1550 = vpow.pop %v1549
    %v1551 = vadd.f32 %v1550, 1.0
    %v1552 = vrcp.pop %v1551
    %v1553 = vmul.f32 1.0, %v1552
    %v1554 = vmul.f32 %v1546, %v1379
    %v1555 = vmul.f32 %v1540, %v1547
    %v1556 = vadd.f32 %v1554, %v1555
    %v1557 = vtanh.pop %v1556
    %v1558 = vmul.f32 %v1553, %v1557
    %s1559 = scalar_lea.vmem [#allocation12], 56
    %1560 = vst [vmem:[%s1559] sm:$0xff] %v1558
    %1561 = vst [vmem:[#allocation2] sm:$0xff] %v1558
    %1562 = vst [vmem:[#allocation3] sm:$0xff] %v1556
    // Predicated region
    $region38: #{tpu_custom_call.1} parent=1 // pred_check
      %p1563 = pneg %p73
    $region39: #{tpu_custom_call.1} parent=1 // pred_check_branch
      %1565 = sbr.rel (%p1563) target = $region41
    $region40: #{tpu_custom_call.1} parent=1 // pred_region
      %1566 = vst [vmem:[#allocation13] sm:$0xff] %v1558
      %1567 = vst [vmem:[#allocation15] sm:$0xff] %v1556
    $region41: #{tpu_custom_call.1} parent=1 // pred_fallthru
      _
    // Predicated region
    $region42: #{tpu_custom_call.1} parent=1 // pred_check
      _
    $region43: #{tpu_custom_call.1} parent=1 // pred_check_branch
      %1569 = sbr.rel (0) target = $region45
    $region44: #{tpu_custom_call.1} parent=1 // pred_region
      %s1571 = ssub.s32 1024, 1024
      %1572 = vsyncadd [#allocation6], %s1571
      %s1573 = sshll.u32 [#allocation12], 4
      %s1574 = int_to_ptr.vmem [resolvable:$true] %s1573
      %1579 = dma.vmem_to_hbm [thread:$0]  %s1574, 1024, %s4, [#allocation6], 128, 128, 8
    $region45: #{tpu_custom_call.1} parent=1 // pred_fallthru
      _
    // Predicated region
    $region46: #{tpu_custom_call.1} parent=1 // pred_check
      _
    $region47: #{tpu_custom_call.1} parent=1 // pred_check_branch
      %1581 = sbr.rel (0) target = $region49
    $region48: #{tpu_custom_call.1} parent=1 // pred_region
      %s1583 = ssub.s32 128, 128
      %1584 = vsyncadd [#allocation14], %s1583
      %s1586 = sshll.u32 [#allocation13], 4
      %s1587 = int_to_ptr.vmem [resolvable:$true] %s1586
      %1589 = dma.vmem_to_hbm [thread:$0]  %s1587, 128, %s5, [#allocation14]
    $region49: #{tpu_custom_call.1} parent=1 // pred_fallthru
      _
    // Predicated region
    $region50: #{tpu_custom_call.1} parent=1 // pred_check
      _
    $region51: #{tpu_custom_call.1} parent=1 // pred_check_branch
      %1591 = sbr.rel (0) target = $region53
    $region52: #{tpu_custom_call.1} parent=1 // pred_region
      %s1593 = ssub.s32 128, 128
      %1594 = vsyncadd [#allocation14], %s1593
      %s1596 = sshll.u32 [#allocation15], 4
      %s1597 = int_to_ptr.vmem [resolvable:$true] %s1596
      %1599 = dma.vmem_to_hbm [thread:$0]  %s1597, 128, %s6, [#allocation14]
    $region53: #{tpu_custom_call.1} parent=1 // pred_fallthru
      _
    // Predicated region
    $region54: #{tpu_custom_call.1} parent=1 // pred_check
      _
    $region55: #{tpu_custom_call.1} parent=1 // pred_check_branch
      %1601 = sbr.rel (0) target = $region57
    $region56: #{tpu_custom_call.1} parent=1 // pred_region
      %1602 = dma.done [#allocation6], 1024
    $region57: #{tpu_custom_call.1} parent=1 // pred_fallthru
      _
    // Predicated region
    $region58: #{tpu_custom_call.1} parent=1 // pred_check
      _
    $region59: #{tpu_custom_call.1} parent=1 // pred_check_branch
      %1604 = sbr.rel (0) target = $region61
    $region60: #{tpu_custom_call.1} parent=1 // pred_region
      %1605 = dma.done [#allocation14], 128
    $region61: #{tpu_custom_call.1} parent=1 // pred_fallthru
      _
    // Predicated region
    $region62: #{tpu_custom_call.1} parent=1 // pred_check
      _
    $region63: #{tpu_custom_call.1} parent=1 // pred_check_branch
      %1607 = sbr.rel (0) target = $region65
    $region64: #{tpu_custom_call.1} parent=1 // pred_region
      %1608 = dma.done [#allocation14], 128
    $region65: #{tpu_custom_call.1} parent=1 // pred_fallthru
      _
    %1609 = vsyncpa [#allocation5], 1
    %1610 = vsyncpa [#allocation8], 1
    %1611 = vsyncpa [#allocation11], 1
    %1612 = vsyncpa [#allocation6], 1
    %1613 = vsyncpa [#allocation14], 1

</llo_original>
